<compile_context>
chip_gen: v6e
topology: v6e:2x2x1
jax: 0.10.0
libtpu: 0.0.40
codegen_flags: <defaults>
</compile_context>

<pallas_src>
import functools
import math

import jax
import jax.numpy as jnp
from jax.experimental import pallas as pl
from jax.experimental.pallas import tpu as pltpu


def _round_up(a, b):
    return -(-a // b) * b


def _gcn_v_kernel(adj_ref, xk_ref, xn_ref, wself_ref, wagg_ref, bgc_ref,
                  w1_ref, b1_ref, alpha_ref, w2t_ref, b2_ref,
                  *out_and_scratch, write_h):
    # adj_ref : (tn, tk)  adjacency tile for (node block i, reduction block k)
    # xk_ref  : (tk, D)   feature rows for reduction block k   (aggregation term)
    # xn_ref  : (tn, D)   feature rows for node block i        (self term)
    # w2t_ref : (C, H)    transposed classifier head -> lane-dense pred store
    if write_h:
        pred_ref, h_ref, acc_ref = out_and_scratch
    else:
        pred_ref, acc_ref = out_and_scratch
        h_ref = None

    k = pl.program_id(1)

    @pl.when(k == 0)
    def _init():
        acc_ref[...] = jnp.zeros_like(acc_ref)

    # MeanAggregator partial sum: acc += adj[i, k] @ x[k]  (adj already row-normalized)
    acc_ref[...] += jnp.dot(adj_ref[...], xk_ref[...],
                            preferred_element_type=jnp.float32)

    @pl.when(k == pl.num_programs(1) - 1)
    def _epilogue():
        agg = acc_ref[...]                                   # (tn, D) f32
        x_tile = xn_ref[...]                                 # (tn, D) compute dtype

        # GraphConv: concat([x, agg]) @ W_gc == x @ W_self + agg @ W_agg
        h = (jnp.dot(x_tile, wself_ref[...], preferred_element_type=jnp.float32)
             + jnp.dot(agg.astype(wagg_ref.dtype), wagg_ref[...],
                       preferred_element_type=jnp.float32)
             + bgc_ref[...])
        h = jnp.maximum(h, 0.0)                              # ReLU -> (tn, H) f32
        if write_h:
            h_ref[...] = h.astype(h_ref.dtype)

        # classifier: Linear(H, H) -> PReLU(H) -> Linear(H, C)
        z = (jnp.dot(h.astype(w1_ref.dtype), w1_ref[...],
                     preferred_element_type=jnp.float32) + b1_ref[...])
        z = jnp.where(z > 0.0, z, alpha_ref[...] * z)        # (tn, H) f32

        # Lane-dense transposed projection: contract H of (C, H) with H of (tn, H)
        # -> (C, tn) so the pred store is a full-lane row (C=1 => 128-lane vreg rows).
        pred_t = jax.lax.dot_general(
            w2t_ref[...], z,
            dimension_numbers=(((1,), (1,)), ((), ())),
            preferred_element_type=jnp.float32) + b2_ref[...]
        pred_ref[...] = pred_t.astype(pred_ref.dtype)


@functools.partial(jax.jit, static_argnames=("tn", "tk", "output_feat",
                                              "compute_dtype", "vmem_limit_mb"))
def gcn_v_forward(x, adj, params, *, tn=256, tk=512, output_feat=False,
                  compute_dtype=jnp.bfloat16, vmem_limit_mb=32):
    N, D = x.shape
    H = params["w1"].shape[0]
    C = params["w2"].shape[1]

    assert tn % 128 == 0 and tk % 128 == 0, "tn / tk must be multiples of 128"

    # --- tile-align the node dimension (zero padding preserves valid-row results) ---
    Np = _round_up(N, 128)
    tn = min(tn, Np)
    tk = min(tk, Np)
    Np = _round_up(Np, math.lcm(tn, tk))
    pad = Np - N

    # split GraphConv weight (2D, H) into self / aggregated halves (algebraically
    # identical to the concat-matmul); big matmul operands in compute dtype.
    w_gc = params["w_gc"]
    w_self = w_gc[:D].astype(compute_dtype)
    w_agg = w_gc[D:].astype(compute_dtype)
    w1 = params["w1"].astype(compute_dtype)
    w2t = params["w2"].T.astype(jnp.float32)                 # (C, H), tiny -> keep f32
    b_gc = params["b_gc"].reshape(1, H).astype(jnp.float32)
    b1 = params["b1"].reshape(1, H).astype(jnp.float32)
    alpha = params["alpha"].reshape(1, H).astype(jnp.float32)
    b2 = params["b2"].reshape(C, 1).astype(jnp.float32)

    adj_c = adj.astype(compute_dtype)
    x_c = x.astype(compute_dtype)
    if pad:
        adj_c = jnp.pad(adj_c, ((0, pad), (0, pad)))
        x_c = jnp.pad(x_c, ((0, pad), (0, 0)))

    grid = (Np // tn, Np // tk)

    in_specs = (
        pl.BlockSpec((tn, tk), lambda i, k: (i, k)),          # adj tile (dominant stream)
        pl.BlockSpec((tk, D), lambda i, k: (k, 0)),           # x reduction tile
        pl.BlockSpec((tn, D), lambda i, k: (i, 0)),           # x node tile (resident over k)
        pl.BlockSpec((D, H), lambda i, k: (0, 0)),            # W_self
        pl.BlockSpec((D, H), lambda i, k: (0, 0)),            # W_agg
        pl.BlockSpec((1, H), lambda i, k: (0, 0)),            # b_gc
        pl.BlockSpec((H, H), lambda i, k: (0, 0)),            # W1
        pl.BlockSpec((1, H), lambda i, k: (0, 0)),            # b1
        pl.BlockSpec((1, H), lambda i, k: (0, 0)),            # PReLU alpha
        pl.BlockSpec((C, H), lambda i, k: (0, 0)),            # W2^T
        pl.BlockSpec((C, 1), lambda i, k: (0, 0)),            # b2
    )

    pred_spec = pl.BlockSpec((C, tn), lambda i, k: (0, i))    # lane-dense transposed pred
    pred_shape = jax.ShapeDtypeStruct((C, Np), jnp.float32)

    if output_feat:
        out_specs = (pred_spec, pl.BlockSpec((tn, H), lambda i, k: (i, 0)))
        out_shape = (pred_shape, jax.ShapeDtypeStruct((Np, H), x.dtype))
    else:
        out_specs = (pred_spec,)
        out_shape = (pred_shape,)

    itemsize = jnp.dtype(compute_dtype).itemsize
    flops = (2 * Np * Np * D                     # aggregation
             + 2 * Np * D * H * 2                # GraphConv (self + agg halves)
             + 2 * Np * H * H                    # classifier Linear 1
             + 2 * Np * H * C)                   # classifier Linear 2
    bytes_accessed = (Np * Np * itemsize                       # adj stream (dominant)
                      + (Np // tn) * Np * D * itemsize         # x re-read per node block
                      + Np * D * itemsize                      # x node tiles
                      + (2 * D * H + H * H + C * H) * itemsize
                      + Np * C * 4
                      + (Np * H * jnp.dtype(x.dtype).itemsize if output_feat else 0))

    grid_spec = pltpu.PrefetchScalarGridSpec(
        num_scalar_prefetch=0,
        grid=grid,
        in_specs=in_specs,
        out_specs=out_specs,
        scratch_shapes=[pltpu.VMEM((tn, D), jnp.float32)],     # aggregation accumulator
    )

    outs = pl.pallas_call(
        functools.partial(_gcn_v_kernel, write_h=output_feat),
        out_shape=out_shape,
        grid_spec=grid_spec,
        compiler_params=pltpu.CompilerParams(
            dimension_semantics=("parallel", "arbitrary"),
            vmem_limit_bytes=vmem_limit_mb * 1024 * 1024),
        cost_estimate=pl.CostEstimate(flops=flops, transcendentals=0,
                                      bytes_accessed=bytes_accessed),
    )(adj_c, x_c, x_c, w_self, w_agg, b_gc, w1, b1, alpha, w2t, b2)

    if output_feat:
        pred_t, h = outs
        h = h[:N]
    else:
        (pred_t,) = outs
        h = None

    # (C, Np) -> drop padding -> (N, C) -> flat, matching torch `.view(-1)` on (N, C).
    pred = pred_t[:, :N].T.reshape(-1).astype(x.dtype)
    return pred, h


def init_params(key, feature_dim, nhid, nclass):
    ks = jax.random.split(key, 6)
    scale = lambda fan_in: 1.0 / jnp.sqrt(jnp.float32(fan_in))
    return {
        # GraphConv: weight (2*feature_dim, nhid), bias zeros
        "w_gc": jax.random.normal(ks[0], (2 * feature_dim, nhid), jnp.float32)
                * scale(2 * feature_dim),
        "b_gc": jnp.zeros((nhid,), jnp.float32),
        # classifier Linear(nhid, nhid)
        "w1": jax.random.normal(ks[1], (nhid, nhid), jnp.float32) * scale(nhid),
        "b1": jax.random.normal(ks[2], (nhid,), jnp.float32) * 0.01,
        # PReLU(nhid): torch default 0.25 per channel
        "alpha": jnp.full((nhid,), 0.25, jnp.float32),
        # classifier Linear(nhid, nclass)
        "w2": jax.random.normal(ks[3], (nhid, nclass), jnp.float32) * scale(nhid),
        "b2": jax.random.normal(ks[4], (nclass,), jnp.float32) * 0.01,
    }


def reference_forward(x, adj, p):
    agg = adj @ x
    cat = jnp.concatenate([x, agg], axis=-1)
    h = jnp.maximum(cat @ p["w_gc"] + p["b_gc"], 0.0)
    z = h @ p["w1"] + p["b1"]
    z = jnp.where(z > 0.0, z, p["alpha"] * z)
    pred = (z @ p["w2"] + p["b2"]).reshape(-1)
    return pred, h


def _make_inputs(key, n, feature_dim):
    kx, kadj = jax.random.split(key)
    x = jax.random.normal(kx, (n, feature_dim), jnp.float32)
    # dense row-normalized adjacency (MeanAggregator expects a normalized adj)
    raw = (jax.random.uniform(kadj, (n, n)) < 0.1).astype(jnp.float32)
    raw = raw + jnp.eye(n, dtype=jnp.float32)
    adj = raw / jnp.sum(raw, axis=1, keepdims=True)
    return x, adj


if __name__ == "__main__":
    feature_dim, nhid, nclass = 128, 128, 1
    key = jax.random.PRNGKey(0)
    kin, kin2, kp = jax.random.split(key, 3)
    params = init_params(kp, feature_dim, nhid, nclass)

    # --- lane-aligned graph: f32 path (tight check) + bf16 default path ---
    N = 256
    x, adj = _make_inputs(kin, N, feature_dim)
    pred_ref_val, feat_ref_val = reference_forward(x, adj, params)

    pred32, feat32 = gcn_v_forward(x, adj, params, tn=128, tk=128,
                                   output_feat=True, compute_dtype=jnp.float32)
    jax.block_until_ready((pred32, feat32))
    assert pred32.shape == (N * nclass,)
    assert feat32.shape == (N, nhid)
    assert jnp.allclose(pred32, pred_ref_val, atol=1e-4, rtol=1e-4)
    assert jnp.allclose(feat32, feat_ref_val, atol=1e-4, rtol=1e-4)

    pred16, feat16 = gcn_v_forward(x, adj, params, output_feat=False,
                                   compute_dtype=jnp.bfloat16)
    jax.block_until_ready(pred16)
    assert feat16 is None
    assert pred16.shape == (N * nclass,)
    assert jnp.allclose(pred16, pred_ref_val, atol=1e-1, rtol=1e-1)

    # --- ragged graph (N not tile aligned): exercises the zero-padding path ---
    N2 = 200
    x2, adj2 = _make_inputs(kin2, N2, feature_dim)
    pred_ref2, feat_ref2 = reference_forward(x2, adj2, params)
    pred_r, feat_r = gcn_v_forward(x2, adj2, params, output_feat=True,
                                   compute_dtype=jnp.float32)
    jax.block_until_ready((pred_r, feat_r))
    assert pred_r.shape == (N2 * nclass,)
    assert feat_r.shape == (N2, nhid)
    assert jnp.allclose(pred_r, pred_ref2, atol=1e-4, rtol=1e-4)
    assert jnp.allclose(feat_r, feat_ref2, atol=1e-4, rtol=1e-4)

    print("KERNEL_OK")
</pallas_src>

<mosaic_0001>
module attributes {stable_mosaic.version = 11 : i64} {
  func.func @_gcn_v_kernel(%arg0: i32, %arg1: i32, %arg2: memref<128x128xf32, #tpu.memory_space<vmem>>, %arg3: memref<128x128xf32, #tpu.memory_space<vmem>>, %arg4: memref<128x128xf32, #tpu.memory_space<vmem>>, %arg5: memref<128x128xf32, #tpu.memory_space<vmem>>, %arg6: memref<128x128xf32, #tpu.memory_space<vmem>>, %arg7: memref<1x128xf32, #tpu.memory_space<vmem>>, %arg8: memref<128x128xf32, #tpu.memory_space<vmem>>, %arg9: memref<1x128xf32, #tpu.memory_space<vmem>>, %arg10: memref<1x128xf32, #tpu.memory_space<vmem>>, %arg11: memref<1x128xf32, #tpu.memory_space<vmem>>, %arg12: memref<1x1xf32, #tpu.memory_space<vmem>>, %arg13: memref<1x128xf32, #tpu.memory_space<vmem>>, %arg14: memref<128x128xf32, #tpu.memory_space<vmem>>, %arg15: memref<128x128xf32, #tpu.memory_space<vmem>>) attributes {dimension_semantics = [#tpu.dimension_semantics<parallel>, #tpu.dimension_semantics<arbitrary>], iteration_bounds = array<i64: 2, 2>, scalar_prefetch = 0 : i64, scratch_operands = 1 : i64, tpu.core_type = #tpu.core_type<tc>, window_params = [{transform_indices = @transform_0, window_bounds = array<i64: 128, 128>}, {transform_indices = @transform_1, window_bounds = array<i64: 128, 128>}, {transform_indices = @transform_2, window_bounds = array<i64: 128, 128>}, {pipeline_mode = #tpu.pipeline_mode<synchronous>, transform_indices = @transform_3, window_bounds = array<i64: 128, 128>}, {pipeline_mode = #tpu.pipeline_mode<synchronous>, transform_indices = @transform_4, window_bounds = array<i64: 128, 128>}, {pipeline_mode = #tpu.pipeline_mode<synchronous>, transform_indices = @transform_5, window_bounds = array<i64: 1, 128>}, {pipeline_mode = #tpu.pipeline_mode<synchronous>, transform_indices = @transform_6, window_bounds = array<i64: 128, 128>}, {pipeline_mode = #tpu.pipeline_mode<synchronous>, transform_indices = @transform_7, window_bounds = array<i64: 1, 128>}, {pipeline_mode = #tpu.pipeline_mode<synchronous>, transform_indices = @transform_8, window_bounds = array<i64: 1, 128>}, {pipeline_mode = #tpu.pipeline_mode<synchronous>, transform_indices = @transform_9, window_bounds = array<i64: 1, 128>}, {pipeline_mode = #tpu.pipeline_mode<synchronous>, transform_indices = @transform_10, window_bounds = array<i64: 1, 1>}, {transform_indices = @transform_11, window_bounds = array<i64: 1, 128>}, {transform_indices = @transform_12, window_bounds = array<i64: 128, 128>}]} {
    %c0_i32 = arith.constant 0 : i32
    %0 = arith.cmpi eq, %arg1, %c0_i32 : i32
    %1 = arith.extui %0 : i1 to i32
    %c0_i32_0 = arith.constant 0 : i32
    %2 = arith.cmpi ne, %1, %c0_i32_0 : i32
    scf.if %2 {
      %cst_9 = arith.constant 0.000000e+00 : f32
      %12 = vector.broadcast %cst_9 : f32 to vector<128x128xf32>
      %c0_10 = arith.constant 0 : index
      %c0_11 = arith.constant 0 : index
      %13 = vector.load %arg15[%c0_10, %c0_11] : memref<128x128xf32, #tpu.memory_space<vmem>>, vector<128x128xf32>
      tpu.vector_store %arg15[%c0_10, %c0_11], %12 {strides = array<i32>} : memref<128x128xf32, #tpu.memory_space<vmem>>, vector<128x128xf32>,
    } else {
    }
    %c0 = arith.constant 0 : index
    %c0_1 = arith.constant 0 : index
    %3 = vector.load %arg15[%c0, %c0_1] : memref<128x128xf32, #tpu.memory_space<vmem>>, vector<128x128xf32>
    %c0_2 = arith.constant 0 : index
    %c0_3 = arith.constant 0 : index
    %4 = vector.load %arg2[%c0_2, %c0_3] : memref<128x128xf32, #tpu.memory_space<vmem>>, vector<128x128xf32>
    %c0_4 = arith.constant 0 : index
    %c0_5 = arith.constant 0 : index
    %5 = vector.load %arg3[%c0_4, %c0_5] : memref<128x128xf32, #tpu.memory_space<vmem>>, vector<128x128xf32>
    %cst = arith.constant dense<0.000000e+00> : vector<128x128xf32>
    %6 = tpu.matmul %4, %5, %cst {dimension_numbers = #tpu.dot_dimension_numbers<[1], [0], [0], [1], [0, 0, 1, 1], [], []>} : vector<128x128xf32>, vector<128x128xf32>, vector<128x128xf32> -> vector<128x128xf32>
    %7 = arith.addf %3, %6 : vector<128x128xf32>
    %c0_6 = arith.constant 0 : index
    %c0_7 = arith.constant 0 : index
    %8 = vector.load %arg15[%c0_6, %c0_7] : memref<128x128xf32, #tpu.memory_space<vmem>>, vector<128x128xf32>
    tpu.vector_store %arg15[%c0_6, %c0_7], %7 {strides = array<i32>} : memref<128x128xf32, #tpu.memory_space<vmem>>, vector<128x128xf32>,
    %c1_i32 = arith.constant 1 : i32
    %9 = arith.cmpi eq, %arg1, %c1_i32 : i32
    %10 = arith.extui %9 : i1 to i32
    %c0_i32_8 = arith.constant 0 : i32
    %11 = arith.cmpi ne, %10, %c0_i32_8 : i32
    scf.if %11 {
      %c0_9 = arith.constant 0 : index
      %c0_10 = arith.constant 0 : index
      %12 = vector.load %arg15[%c0_9, %c0_10] : memref<128x128xf32, #tpu.memory_space<vmem>>, vector<128x128xf32>
      %c0_11 = arith.constant 0 : index
      %c0_12 = arith.constant 0 : index
      %13 = vector.load %arg4[%c0_11, %c0_12] : memref<128x128xf32, #tpu.memory_space<vmem>>, vector<128x128xf32>
      %c0_13 = arith.constant 0 : index
      %c0_14 = arith.constant 0 : index
      %14 = vector.load %arg5[%c0_13, %c0_14] : memref<128x128xf32, #tpu.memory_space<vmem>>, vector<128x128xf32>
      %cst_15 = arith.constant dense<0.000000e+00> : vector<128x128xf32>
      %15 = tpu.matmul %13, %14, %cst_15 {dimension_numbers = #tpu.dot_dimension_numbers<[1], [0], [0], [1], [0, 0, 1, 1], [], []>} : vector<128x128xf32>, vector<128x128xf32>, vector<128x128xf32> -> vector<128x128xf32>
      %c0_16 = arith.constant 0 : index
      %c0_17 = arith.constant 0 : index
      %16 = vector.load %arg6[%c0_16, %c0_17] : memref<128x128xf32, #tpu.memory_space<vmem>>, vector<128x128xf32>
      %cst_18 = arith.constant dense<0.000000e+00> : vector<128x128xf32>
      %17 = tpu.matmul %12, %16, %cst_18 {dimension_numbers = #tpu.dot_dimension_numbers<[1], [0], [0], [1], [0, 0, 1, 1], [], []>} : vector<128x128xf32>, vector<128x128xf32>, vector<128x128xf32> -> vector<128x128xf32>
      %18 = arith.addf %15, %17 : vector<128x128xf32>
      %c0_19 = arith.constant 0 : index
      %c0_20 = arith.constant 0 : index
      %19 = vector.load %arg7[%c0_19, %c0_20] : memref<1x128xf32, #tpu.memory_space<vmem>>, vector<1x128xf32>
      %20 = vector.broadcast %19 : vector<1x128xf32> to vector<128x128xf32>
      %21 = arith.addf %18, %20 : vector<128x128xf32>
      %cst_21 = arith.constant 0.000000e+00 : f32
      %22 = vector.broadcast %cst_21 : f32 to vector<128x128xf32>
      %23 = arith.maximumf %21, %22 : vector<128x128xf32>
      %c0_22 = arith.constant 0 : index
      %c0_23 = arith.constant 0 : index
      %24 = vector.load %arg14[%c0_22, %c0_23] : memref<128x128xf32, #tpu.memory_space<vmem>>, vector<128x128xf32>
      tpu.vector_store %arg14[%c0_22, %c0_23], %23 {strides = array<i32>} : memref<128x128xf32, #tpu.memory_space<vmem>>, vector<128x128xf32>,
      %c0_24 = arith.constant 0 : index
      %c0_25 = arith.constant 0 : index
      %25 = vector.load %arg8[%c0_24, %c0_25] : memref<128x128xf32, #tpu.memory_space<vmem>>, vector<128x128xf32>
      %cst_26 = arith.constant dense<0.000000e+00> : vector<128x128xf32>
      %26 = tpu.matmul %23, %25, %cst_26 {dimension_numbers = #tpu.dot_dimension_numbers<[1], [0], [0], [1], [0, 0, 1, 1], [], []>} : vector<128x128xf32>, vector<128x128xf32>, vector<128x128xf32> -> vector<128x128xf32>
      %c0_27 = arith.constant 0 : index
      %c0_28 = arith.constant 0 : index
      %27 = vector.load %arg9[%c0_27, %c0_28] : memref<1x128xf32, #tpu.memory_space<vmem>>, vector<1x128xf32>
      %28 = vector.broadcast %27 : vector<1x128xf32> to vector<128x128xf32>
      %29 = arith.addf %26, %28 : vector<128x128xf32>
      %cst_29 = arith.constant 0.000000e+00 : f32
      %30 = vector.broadcast %cst_29 : f32 to vector<128x128xf32>
      %31 = arith.cmpf ogt, %29, %30 : vector<128x128xf32>
      %c0_30 = arith.constant 0 : index
      %c0_31 = arith.constant 0 : index
      %32 = vector.load %arg10[%c0_30, %c0_31] : memref<1x128xf32, #tpu.memory_space<vmem>>, vector<1x128xf32>
      %33 = vector.broadcast %32 : vector<1x128xf32> to vector<128x128xf32>
      %34 = arith.mulf %33, %29 : vector<128x128xf32>
      %35 = arith.select %31, %29, %34 : vector<128x128xi1>, vector<128x128xf32>
      %c0_32 = arith.constant 0 : index
      %c0_33 = arith.constant 0 : index
      %36 = vector.load %arg11[%c0_32, %c0_33] : memref<1x128xf32, #tpu.memory_space<vmem>>, vector<1x128xf32>
      %cst_34 = arith.constant dense<0.000000e+00> : vector<1x128xf32>
      %37 = tpu.matmul %36, %35, %cst_34 {dimension_numbers = #tpu.dot_dimension_numbers<[1], [1], [0], [0], [0, 0, 1, 0], [], []>} : vector<1x128xf32>, vector<128x128xf32>, vector<1x128xf32> -> vector<1x128xf32>
      %c0_35 = arith.constant 0 : index
      %c0_36 = arith.constant 0 : index
      %38 = vector.load %arg12[%c0_35, %c0_36] : memref<1x1xf32, #tpu.memory_space<vmem>>, vector<1x1xf32>
      %39 = vector.broadcast %38 : vector<1x1xf32> to vector<1x128xf32>
      %40 = arith.addf %37, %39 : vector<1x128xf32>
      %c0_37 = arith.constant 0 : index
      %c0_38 = arith.constant 0 : index
      %41 = vector.load %arg13[%c0_37, %c0_38] : memref<1x128xf32, #tpu.memory_space<vmem>>, vector<1x128xf32>
      tpu.vector_store %arg13[%c0_37, %c0_38], %40 {strides = array<i32>} : memref<1x128xf32, #tpu.memory_space<vmem>>, vector<1x128xf32>,
    } else {
    }
    return
  }
  func.func @transform_0(%arg0: i32, %arg1: i32) -> (i32, i32) {
    %c0_i32 = arith.constant 0 : i32
    return %arg0, %arg1 : i32, i32
  }
  func.func @transform_1(%arg0: i32, %arg1: i32) -> (i32, i32) {
    %c0_i32 = arith.constant 0 : i32
    %c0_i32_0 = arith.constant 0 : i32
    return %arg1, %c0_i32 : i32, i32
  }
  func.func @transform_2(%arg0: i32, %arg1: i32) -> (i32, i32) {
    %c0_i32 = arith.constant 0 : i32
    %c0_i32_0 = arith.constant 0 : i32
    return %arg0, %c0_i32 : i32, i32
  }
  func.func @transform_3(%arg0: i32, %arg1: i32) -> (i32, i32) {
    %c0_i32 = arith.constant 0 : i32
    %c0_i32_0 = arith.constant 0 : i32
    %c0_i32_1 = arith.constant 0 : i32
    return %c0_i32, %c0_i32_0 : i32, i32
  }
  func.func @transform_4(%arg0: i32, %arg1: i32) -> (i32, i32) {
    %c0_i32 = arith.constant 0 : i32
    %c0_i32_0 = arith.constant 0 : i32
    %c0_i32_1 = arith.constant 0 : i32
    return %c0_i32, %c0_i32_0 : i32, i32
  }
  func.func @transform_5(%arg0: i32, %arg1: i32) -> (i32, i32) {
    %c0_i32 = arith.constant 0 : i32
    %c0_i32_0 = arith.constant 0 : i32
    %c0_i32_1 = arith.constant 0 : i32
    return %c0_i32, %c0_i32_0 : i32, i32
  }
  func.func @transform_6(%arg0: i32, %arg1: i32) -> (i32, i32) {
    %c0_i32 = arith.constant 0 : i32
    %c0_i32_0 = arith.constant 0 : i32
    %c0_i32_1 = arith.constant 0 : i32
    return %c0_i32, %c0_i32_0 : i32, i32
  }
  func.func @transform_7(%arg0: i32, %arg1: i32) -> (i32, i32) {
    %c0_i32 = arith.constant 0 : i32
    %c0_i32_0 = arith.constant 0 : i32
    %c0_i32_1 = arith.constant 0 : i32
    return %c0_i32, %c0_i32_0 : i32, i32
  }
  func.func @transform_8(%arg0: i32, %arg1: i32) -> (i32, i32) {
    %c0_i32 = arith.constant 0 : i32
    %c0_i32_0 = arith.constant 0 : i32
    %c0_i32_1 = arith.constant 0 : i32
    return %c0_i32, %c0_i32_0 : i32, i32
  }
  func.func @transform_9(%arg0: i32, %arg1: i32) -> (i32, i32) {
    %c0_i32 = arith.constant 0 : i32
    %c0_i32_0 = arith.constant 0 : i32
    %c0_i32_1 = arith.constant 0 : i32
    return %c0_i32, %c0_i32_0 : i32, i32
  }
  func.func @transform_10(%arg0: i32, %arg1: i32) -> (i32, i32) {
    %c0_i32 = arith.constant 0 : i32
    %c0_i32_0 = arith.constant 0 : i32
    %c0_i32_1 = arith.constant 0 : i32
    return %c0_i32, %c0_i32_0 : i32, i32
  }
  func.func @transform_11(%arg0: i32, %arg1: i32) -> (i32, i32) {
    %c0_i32 = arith.constant 0 : i32
    %c0_i32_0 = arith.constant 0 : i32
    return %c0_i32, %arg0 : i32, i32
  }
  func.func @transform_12(%arg0: i32, %arg1: i32) -> (i32, i32) {
    %c0_i32 = arith.constant 0 : i32
    %c0_i32_0 = arith.constant 0 : i32
    return %arg0, %c0_i32 : i32, i32
  }
}

</mosaic_0001>

<llo_original>
// kernel: gcn_v_forward.1
$region0: #{gcn_v_forward.1}
  #allocation0 [shape = 'u32[]', space=smem, size = 0x4, offset = 0x4, fixed_abs, tag = 'smem constant byte address 0x4 - core index']
  #allocation1 [shape = 'u32[144,128]{1,0:T(1,128)}', space=vmem, size = 0x12000, scoped, tag = 'internal scratch']
  #allocation2 [shape = 'f32[128,128]{1,0:T(8,128)}', space=vmem, size = 0x10000, scoped, tag = 'scratch operand']
  #allocation3 [shape = 'f32[1,1]{1,0:T(1,128)S(1)}', space=vmem, size = 0x200, scoped, tag = 'scoped memory for gcn_v_forward.1']
  %s0 = inlined_call_operand.hbm [shape: f32[256,256], index: 0, kind: input, shape index: {}]
  %s1 = inlined_call_operand.vmem [shape: f32[256,128], index: 1, kind: input, shape index: {}, may-alias: {1,2}]
  %s2 = inlined_call_operand.vmem [shape: f32[256,128], index: 2, kind: input, shape index: {}, may-alias: {1,2}]
  %s3 = inlined_call_operand.vmem [shape: f32[128,128], index: 3, kind: input, shape index: {}]
  %s4 = inlined_call_operand.vmem [shape: f32[128,128], index: 4, kind: input, shape index: {}]
  %s5 = inlined_call_operand.vmem [shape: f32[1,128], index: 5, kind: input, shape index: {}]
  %s6 = inlined_call_operand.vmem [shape: f32[128,128], index: 6, kind: input, shape index: {}]
  %s7 = inlined_call_operand.vmem [shape: f32[1,128], index: 7, kind: input, shape index: {}]
  %s8 = inlined_call_operand.vmem [shape: f32[1,128], index: 8, kind: input, shape index: {}]
  %s9 = inlined_call_operand.vmem [shape: f32[1,128], index: 9, kind: input, shape index: {}]
  %s10 = inlined_call_operand.<no memory space> [shape: f32[1,1], index: 10, kind: input, shape index: {}]
  %s11 = inlined_call_operand.hbm [shape: f32[1,256], index: 11, kind: output, shape index: {0}]
  %s12 = inlined_call_operand.hbm [shape: f32[256,128], index: 12, kind: output, shape index: {1}]
  %13 = xla_tuple %s11, %s12
  %s14 = sld [smem:[#allocation0]]
  $region97: #{gcn_v_forward.1} parent=0
    _
  %s16 = ssub.s32 1, %s14
  %s17 = scalar_select 0, %s16, %s14
  %v18 = vstv %s10
  %19 = vst [vmem:[#allocation3] sm:$0x1] %v18
  $region1: #{gcn_v_forward.1} parent=0
    #allocation4 [shape = 'u8[131072]{0}', space=vmem, size = 0x20000, scoped, tag = 'input window, operand 0']
    #allocation5 [shape = 's32[2]{0}', space=sflag, size = 0x8, scoped, tag = 'scoped memory for gcn_v_forward.1']
    #allocation6 [shape = 's32[2]{0}', space=sflag, size = 0x8, scoped, tag = 'scoped memory for gcn_v_forward.1']
    #allocation7 [shape = 'u8[1024]{0}', space=vmem, size = 0x400, scoped, tag = 'output window, operand 0']
    #allocation8 [shape = 'u8[131072]{0}', space=vmem, size = 0x20000, scoped, tag = 'output window, operand 1']
    #allocation9 [shape = 's32[2]{0}', space=sflag, size = 0x8, scoped, tag = 'scoped memory for gcn_v_forward.1']
    %20 = vsyncpa [#allocation5], 0
    %s21 = scalar_lea.sflag [#allocation5], 1
    %22 = vsyncpa %s21, 0
    %23 = vsyncpa [#allocation6], 0
    %s24 = scalar_lea.sflag [#allocation6], 1
    %25 = vsyncpa %s24, 0
    %26 = vsyncpa [#allocation9], 0
    %s27 = scalar_lea.sflag [#allocation9], 1
    %28 = vsyncpa %s27, 0
    loop: start=0, step=1, limit=6
    $region2: #{gcn_v_forward.1} parent=1 // loop_pre_header
      _
    $region3: #{gcn_v_forward.1} parent=1 // loop_header
      %s30 = sphi 0, %s34
      %p31 = scmp.ge.s32.totalorder %s30, 6
      %s37 = sphi 0, %s49
      %s38 = sphi 0, %s45
      %s39 = sphi 0, %s37
      %s40 = sphi 0, %s38
      %s41 = sphi 0, %s39
      %s42 = sphi 0, %s40
      %s54 = sphi 0, %s56
      %s57 = sphi 0, %s54
      %s58 = sphi 0, %s57
      %s74 = sphi 0, %s58
      %s80 = sphi 0, %s82
      %s83 = sphi 0, %s80
      %s84 = sphi 0, %s83
      %s100 = sphi 0, %s84
      %s106 = sphi 0, %s108
      %s109 = sphi 0, %s106
      %s110 = sphi 0, %s109
      %s126 = sphi 0, %s110
      %s130 = sphi 0, %s130
      %s132 = sphi 0, %s130
      %s133 = sphi 0, %s132
      %s147 = sphi 0, %s133
      %s151 = sphi 0, %s151
      %s153 = sphi 0, %s151
      %s154 = sphi 0, %s153
      %s168 = sphi 0, %s154
      %s172 = sphi 0, %s172
      %s174 = sphi 0, %s172
      %s175 = sphi 0, %s174
      %s189 = sphi 0, %s175
      %s193 = sphi 0, %s193
      %s195 = sphi 0, %s193
      %s196 = sphi 0, %s195
      %s210 = sphi 0, %s196
      %s214 = sphi 0, %s214
      %s216 = sphi 0, %s214
      %s217 = sphi 0, %s216
      %s231 = sphi 0, %s217
      %s235 = sphi 0, %s235
      %s237 = sphi 0, %s235
      %s238 = sphi 0, %s237
      %s252 = sphi 0, %s238
      %s256 = sphi 0, %s256
      %s258 = sphi 0, %s256
      %s259 = sphi 0, %s258
      %s273 = sphi 0, %s259
      %s277 = sphi 0, %s277
      %s279 = sphi 0, %s277
      %s280 = sphi 0, %s279
      %s294 = sphi 0, %s280
      %s300 = sphi 0, %s302
      %s303 = sphi 0, %s300
      %s304 = sphi 0, %s303
      %s320 = sphi 0, %s304
      %s326 = sphi 0, %s328
      %s329 = sphi 0, %s326
      %s330 = sphi 0, %s329
      %s346 = sphi 0, %s330
    $region4: #{gcn_v_forward.1} parent=1 // loop_header_branch
      %33 = sbr.rel (%p31) target = $region8
    $region5: #{gcn_v_forward.1} parent=1 // loop_body
      %s35 = ssub.s32 %s30, 1
      %s36 = ssub.s32 %s30, 2
      %s43 = sadd.s32 1, %s38
      %p44 = scmp.ge.s32.totalorder %s43, 2
      %s45 = scalar_select %p44, 0, %s43
      %s46 = sadd.s32 1, %s37
      %s47 = scalar_select %p44, %s46, %s37
      %p48 = scmp.ge.s32.totalorder %s47, 2
      %s49 = scalar_select %p48, 0, %s47
      %s50 = ssub.s32 %s37, %s49
      %s51 = ssub.s32 %s38, %s45
      %s52 = sor.u32 %s50, %s51
      %p53 = scmp.eq.s32.totalorder %s52, 0
      %s55 = sadd.s32 %s54, 1
      %s56 = scalar_select %p53, %s54, %s55
      %p59 = pneg %p53
      %p60 = scmp.eq.s32.totalorder %s30, 3
      %p61 = por %p59, %p60
      %p62 = scmp.ne.s32.totalorder %s54, %s57
      %p63 = scmp.eq.s32.totalorder %s30, 0
      %p64 = por %p62, %p63
      %p65 = scmp.ne.s32.totalorder %s54, %s57
      %p66 = scmp.eq.s32.totalorder %s35, 3
      %p67 = por %p65, %p66
      %p68 = scmp.ne.s32.totalorder %s57, %s58
      %p69 = scmp.eq.s32.totalorder %s35, 0
      %p70 = por %p68, %p69
      %p71 = scmp.ne.s32.totalorder %s57, %s58
      %p72 = scmp.eq.s32.totalorder %s36, 3
      %p73 = por %p71, %p72
      %p75 = scmp.ne.s32.totalorder %s58, %s74
      %p76 = scmp.eq.s32.totalorder %s36, 0
      %p77 = por %p75, %p76
      %s78 = ssub.s32 %s38, %s45
      %p79 = scmp.eq.s32.totalorder %s78, 0
      %s81 = sadd.s32 %s80, 1
      %s82 = scalar_select %p79, %s80, %s81
      %p85 = pneg %p79
      %p86 = scmp.eq.s32.totalorder %s30, 3
      %p87 = por %p85, %p86
      %p88 = scmp.ne.s32.totalorder %s80, %s83
      %p89 = scmp.eq.s32.totalorder %s30, 0
      %p90 = por %p88, %p89
      %p91 = scmp.ne.s32.totalorder %s80, %s83
      %p92 = scmp.eq.s32.totalorder %s35, 3
      %p93 = por %p91, %p92
      %p94 = scmp.ne.s32.totalorder %s83, %s84
      %p95 = scmp.eq.s32.totalorder %s35, 0
      %p96 = por %p94, %p95
      %p97 = scmp.ne.s32.totalorder %s83, %s84
      %p98 = scmp.eq.s32.totalorder %s36, 3
      %p99 = por %p97, %p98
      %p101 = scmp.ne.s32.totalorder %s84, %s100
      %p102 = scmp.eq.s32.totalorder %s36, 0
      %p103 = por %p101, %p102
      %s104 = ssub.s32 %s37, %s49
      %p105 = scmp.eq.s32.totalorder %s104, 0
      %s107 = sadd.s32 %s106, 1
      %s108 = scalar_select %p105, %s106, %s107
      %p111 = pneg %p105
      %p112 = scmp.eq.s32.totalorder %s30, 3
      %p113 = por %p111, %p112
      %p114 = scmp.ne.s32.totalorder %s106, %s109
      %p115 = scmp.eq.s32.totalorder %s30, 0
      %p116 = por %p114, %p115
      %p117 = scmp.ne.s32.totalorder %s106, %s109
      %p118 = scmp.eq.s32.totalorder %s35, 3
      %p119 = por %p117, %p118
      %p120 = scmp.ne.s32.totalorder %s109, %s110
      %p121 = scmp.eq.s32.totalorder %s35, 0
      %p122 = por %p120, %p121
      %p123 = scmp.ne.s32.totalorder %s109, %s110
      %p124 = scmp.eq.s32.totalorder %s36, 3
      %p125 = por %p123, %p124
      %p127 = scmp.ne.s32.totalorder %s110, %s126
      %p128 = scmp.eq.s32.totalorder %s36, 0
      %p129 = por %p127, %p128
      %s131 = sadd.s32 %s130, 1
      %p134 = scmp.eq.s32.totalorder %s30, 3
      %p135 = scmp.ne.s32.totalorder %s130, %s132
      %p136 = scmp.eq.s32.totalorder %s30, 0
      %p137 = por %p135, %p136
      %p138 = scmp.ne.s32.totalorder %s130, %s132
      %p139 = scmp.eq.s32.totalorder %s35, 3
      %p140 = por %p138, %p139
      %p141 = scmp.ne.s32.totalorder %s132, %s133
      %p142 = scmp.eq.s32.totalorder %s35, 0
      %p143 = por %p141, %p142
      %p144 = scmp.ne.s32.totalorder %s132, %s133
      %p145 = scmp.eq.s32.totalorder %s36, 3
      %p146 = por %p144, %p145
      %p148 = scmp.ne.s32.totalorder %s133, %s147
      %p149 = scmp.eq.s32.totalorder %s36, 0
      %p150 = por %p148, %p149
      %s152 = sadd.s32 %s151, 1
      %p155 = scmp.eq.s32.totalorder %s30, 3
      %p156 = scmp.ne.s32.totalorder %s151, %s153
      %p157 = scmp.eq.s32.totalorder %s30, 0
      %p158 = por %p156, %p157
      %p159 = scmp.ne.s32.totalorder %s151, %s153
      %p160 = scmp.eq.s32.totalorder %s35, 3
      %p161 = por %p159, %p160
      %p162 = scmp.ne.s32.totalorder %s153, %s154
      %p163 = scmp.eq.s32.totalorder %s35, 0
      %p164 = por %p162, %p163
      %p165 = scmp.ne.s32.totalorder %s153, %s154
      %p166 = scmp.eq.s32.totalorder %s36, 3
      %p167 = por %p165, %p166
      %p169 = scmp.ne.s32.totalorder %s154, %s168
      %p170 = scmp.eq.s32.totalorder %s36, 0
      %p171 = por %p169, %p170
      %s173 = sadd.s32 %s172, 1
      %p176 = scmp.eq.s32.totalorder %s30, 3
      %p177 = scmp.ne.s32.totalorder %s172, %s174
      %p178 = scmp.eq.s32.totalorder %s30, 0
      %p179 = por %p177, %p178
      %p180 = scmp.ne.s32.totalorder %s172, %s174
      %p181 = scmp.eq.s32.totalorder %s35, 3
      %p182 = por %p180, %p181
      %p183 = scmp.ne.s32.totalorder %s174, %s175
      %p184 = scmp.eq.s32.totalorder %s35, 0
      %p185 = por %p183, %p184
      %p186 = scmp.ne.s32.totalorder %s174, %s175
      %p187 = scmp.eq.s32.totalorder %s36, 3
      %p188 = por %p186, %p187
      %p190 = scmp.ne.s32.totalorder %s175, %s189
      %p191 = scmp.eq.s32.totalorder %s36, 0
      %p192 = por %p190, %p191
      %s194 = sadd.s32 %s193, 1
      %p197 = scmp.eq.s32.totalorder %s30, 3
      %p198 = scmp.ne.s32.totalorder %s193, %s195
      %p199 = scmp.eq.s32.totalorder %s30, 0
      %p200 = por %p198, %p199
      %p201 = scmp.ne.s32.totalorder %s193, %s195
      %p202 = scmp.eq.s32.totalorder %s35, 3
      %p203 = por %p201, %p202
      %p204 = scmp.ne.s32.totalorder %s195, %s196
      %p205 = scmp.eq.s32.totalorder %s35, 0
      %p206 = por %p204, %p205
      %p207 = scmp.ne.s32.totalorder %s195, %s196
      %p208 = scmp.eq.s32.totalorder %s36, 3
      %p209 = por %p207, %p208
      %p211 = scmp.ne.s32.totalorder %s196, %s210
      %p212 = scmp.eq.s32.totalorder %s36, 0
      %p213 = por %p211, %p212
      %s215 = sadd.s32 %s214, 1
      %p218 = scmp.eq.s32.totalorder %s30, 3
      %p219 = scmp.ne.s32.totalorder %s214, %s216
      %p220 = scmp.eq.s32.totalorder %s30, 0
      %p221 = por %p219, %p220
      %p222 = scmp.ne.s32.totalorder %s214, %s216
      %p223 = scmp.eq.s32.totalorder %s35, 3
      %p224 = por %p222, %p223
      %p225 = scmp.ne.s32.totalorder %s216, %s217
      %p226 = scmp.eq.s32.totalorder %s35, 0
      %p227 = por %p225, %p226
      %p228 = scmp.ne.s32.totalorder %s216, %s217
      %p229 = scmp.eq.s32.totalorder %s36, 3
      %p230 = por %p228, %p229
      %p232 = scmp.ne.s32.totalorder %s217, %s231
      %p233 = scmp.eq.s32.totalorder %s36, 0
      %p234 = por %p232, %p233
      %s236 = sadd.s32 %s235, 1
      %p239 = scmp.eq.s32.totalorder %s30, 3
      %p240 = scmp.ne.s32.totalorder %s235, %s237
      %p241 = scmp.eq.s32.totalorder %s30, 0
      %p242 = por %p240, %p241
      %p243 = scmp.ne.s32.totalorder %s235, %s237
      %p244 = scmp.eq.s32.totalorder %s35, 3
      %p245 = por %p243, %p244
      %p246 = scmp.ne.s32.totalorder %s237, %s238
      %p247 = scmp.eq.s32.totalorder %s35, 0
      %p248 = por %p246, %p247
      %p249 = scmp.ne.s32.totalorder %s237, %s238
      %p250 = scmp.eq.s32.totalorder %s36, 3
      %p251 = por %p249, %p250
      %p253 = scmp.ne.s32.totalorder %s238, %s252
      %p254 = scmp.eq.s32.totalorder %s36, 0
      %p255 = por %p253, %p254
      %s257 = sadd.s32 %s256, 1
      %p260 = scmp.eq.s32.totalorder %s30, 3
      %p261 = scmp.ne.s32.totalorder %s256, %s258
      %p262 = scmp.eq.s32.totalorder %s30, 0
      %p263 = por %p261, %p262
      %p264 = scmp.ne.s32.totalorder %s256, %s258
      %p265 = scmp.eq.s32.totalorder %s35, 3
      %p266 = por %p264, %p265
      %p267 = scmp.ne.s32.totalorder %s258, %s259
      %p268 = scmp.eq.s32.totalorder %s35, 0
      %p269 = por %p267, %p268
      %p270 = scmp.ne.s32.totalorder %s258, %s259
      %p271 = scmp.eq.s32.totalorder %s36, 3
      %p272 = por %p270, %p271
      %p274 = scmp.ne.s32.totalorder %s259, %s273
      %p275 = scmp.eq.s32.totalorder %s36, 0
      %p276 = por %p274, %p275
      %s278 = sadd.s32 %s277, 1
      %p281 = scmp.eq.s32.totalorder %s30, 3
      %p282 = scmp.ne.s32.totalorder %s277, %s279
      %p283 = scmp.eq.s32.totalorder %s30, 0
      %p284 = por %p282, %p283
      %p285 = scmp.ne.s32.totalorder %s277, %s279
      %p286 = scmp.eq.s32.totalorder %s35, 3
      %p287 = por %p285, %p286
      %p288 = scmp.ne.s32.totalorder %s279, %s280
      %p289 = scmp.eq.s32.totalorder %s35, 0
      %p290 = por %p288, %p289
      %p291 = scmp.ne.s32.totalorder %s279, %s280
      %p292 = scmp.eq.s32.totalorder %s36, 3
      %p293 = por %p291, %p292
      %p295 = scmp.ne.s32.totalorder %s280, %s294
      %p296 = scmp.eq.s32.totalorder %s36, 0
      %p297 = por %p295, %p296
      %s298 = ssub.s32 %s37, %s49
      %p299 = scmp.eq.s32.totalorder %s298, 0
      %s301 = sadd.s32 %s300, 1
      %s302 = scalar_select %p299, %s300, %s301
      %p305 = pneg %p299
      %p306 = scmp.eq.s32.totalorder %s30, 3
      %p307 = por %p305, %p306
      %p308 = scmp.ne.s32.totalorder %s300, %s303
      %p309 = scmp.eq.s32.totalorder %s30, 0
      %p310 = por %p308, %p309
      %p311 = scmp.ne.s32.totalorder %s300, %s303
      %p312 = scmp.eq.s32.totalorder %s35, 3
      %p313 = por %p311, %p312
      %p314 = scmp.ne.s32.totalorder %s303, %s304
      %p315 = scmp.eq.s32.totalorder %s35, 0
      %p316 = por %p314, %p315
      %p317 = scmp.ne.s32.totalorder %s303, %s304
      %p318 = scmp.eq.s32.totalorder %s36, 3
      %p319 = por %p317, %p318
      %p321 = scmp.ne.s32.totalorder %s304, %s320
      %p322 = scmp.eq.s32.totalorder %s36, 0
      %p323 = por %p321, %p322
      %s324 = ssub.s32 %s37, %s49
      %p325 = scmp.eq.s32.totalorder %s324, 0
      %s327 = sadd.s32 %s326, 1
      %s328 = scalar_select %p325, %s326, %s327
      %p331 = pneg %p325
      %p332 = scmp.eq.s32.totalorder %s30, 3
      %p333 = por %p331, %p332
      %p334 = scmp.ne.s32.totalorder %s326, %s329
      %p335 = scmp.eq.s32.totalorder %s30, 0
      %p336 = por %p334, %p335
      %p337 = scmp.ne.s32.totalorder %s326, %s329
      %p338 = scmp.eq.s32.totalorder %s35, 3
      %p339 = por %p337, %p338
      %p340 = scmp.ne.s32.totalorder %s329, %s330
      %p341 = scmp.eq.s32.totalorder %s35, 0
      %p342 = por %p340, %p341
      %p343 = scmp.ne.s32.totalorder %s329, %s330
      %p344 = scmp.eq.s32.totalorder %s36, 3
      %p345 = por %p343, %p344
      %p347 = scmp.ne.s32.totalorder %s330, %s346
      %p348 = scmp.eq.s32.totalorder %s36, 0
      %p349 = por %p347, %p348
      %p350 = scmp.le.s32.totalorder 1, %s30
      %p351 = scmp.lt.s32.totalorder %s30, 5
      %p352 = pnand %p350, %p351
      %p353 = pneg %p352
      // Predicated region
      $region9: #{gcn_v_forward.1} parent=5 // pred_check
        _
      $region10: #{gcn_v_forward.1} parent=5 // pred_check_branch
        %355 = sbr.rel (%p352) target = $region12
      $region11: #{gcn_v_forward.1} parent=5 // pred_region
        %s356 = ssub.s32 %s30, 1
        // Predicated region
        $region13: #{gcn_v_forward.1} parent=11 // pred_check
          %p357 = pneg %p143
        $region14: #{gcn_v_forward.1} parent=11 // pred_check_branch
          %359 = sbr.rel (%p357) target = $region16
        $region15: #{gcn_v_forward.1} parent=11 // pred_region
          _
        $region16: #{gcn_v_forward.1} parent=11 // pred_fallthru
          _
        // Predicated region
        $region17: #{gcn_v_forward.1} parent=11 // pred_check
          %p360 = pneg %p164
        $region18: #{gcn_v_forward.1} parent=11 // pred_check_branch
          %362 = sbr.rel (%p360) target = $region20
        $region19: #{gcn_v_forward.1} parent=11 // pred_region
          _
        $region20: #{gcn_v_forward.1} parent=11 // pred_fallthru
          _
        // Predicated region
        $region21: #{gcn_v_forward.1} parent=11 // pred_check
          %p363 = pneg %p185
        $region22: #{gcn_v_forward.1} parent=11 // pred_check_branch
          %365 = sbr.rel (%p363) target = $region24
        $region23: #{gcn_v_forward.1} parent=11 // pred_region
          _
        $region24: #{gcn_v_forward.1} parent=11 // pred_fallthru
          _
        // Predicated region
        $region25: #{gcn_v_forward.1} parent=11 // pred_check
          %p366 = pneg %p206
        $region26: #{gcn_v_forward.1} parent=11 // pred_check_branch
          %368 = sbr.rel (%p366) target = $region28
        $region27: #{gcn_v_forward.1} parent=11 // pred_region
          _
        $region28: #{gcn_v_forward.1} parent=11 // pred_fallthru
          _
        // Predicated region
        $region29: #{gcn_v_forward.1} parent=11 // pred_check
          %p369 = pneg %p227
        $region30: #{gcn_v_forward.1} parent=11 // pred_check_branch
          %371 = sbr.rel (%p369) target = $region32
        $region31: #{gcn_v_forward.1} parent=11 // pred_region
          _
        $region32: #{gcn_v_forward.1} parent=11 // pred_fallthru
          _
        // Predicated region
        $region33: #{gcn_v_forward.1} parent=11 // pred_check
          %p372 = pneg %p248
        $region34: #{gcn_v_forward.1} parent=11 // pred_check_branch
          %374 = sbr.rel (%p372) target = $region36
        $region35: #{gcn_v_forward.1} parent=11 // pred_region
          _
        $region36: #{gcn_v_forward.1} parent=11 // pred_fallthru
          _
        // Predicated region
        $region37: #{gcn_v_forward.1} parent=11 // pred_check
          %p375 = pneg %p269
        $region38: #{gcn_v_forward.1} parent=11 // pred_check_branch
          %377 = sbr.rel (%p375) target = $region40
        $region39: #{gcn_v_forward.1} parent=11 // pred_region
          _
        $region40: #{gcn_v_forward.1} parent=11 // pred_fallthru
          _
        // Predicated region
        $region41: #{gcn_v_forward.1} parent=11 // pred_check
          %p378 = pneg %p290
        $region42: #{gcn_v_forward.1} parent=11 // pred_check_branch
          %380 = sbr.rel (%p378) target = $region44
        $region43: #{gcn_v_forward.1} parent=11 // pred_region
          _
        $region44: #{gcn_v_forward.1} parent=11 // pred_fallthru
          _
      $region12: #{gcn_v_forward.1} parent=5 // pred_fallthru
        _
      %p381 = scmp.lt.s32.totalorder %s30, 4
      // Predicated region
      $region45: #{gcn_v_forward.1} parent=5 // pred_check
        %p382 = pneg %p381
      $region46: #{gcn_v_forward.1} parent=5 // pred_check_branch
        %384 = sbr.rel (%p382) target = $region48
      $region47: #{gcn_v_forward.1} parent=5 // pred_region
        // Predicated region
        $region49: #{gcn_v_forward.1} parent=47 // pred_check
          %p385 = pneg %p64
        $region50: #{gcn_v_forward.1} parent=47 // pred_check_branch
          %387 = sbr.rel (%p385) target = $region52
        $region51: #{gcn_v_forward.1} parent=47 // pred_region
          %s388 = sand.u32 %s54, 1
          %s389 = scalar_lea.sflag [#allocation5], %s388
          %s390 = sand.u32 %s54, 1
          %s391 = smul.addr %s390, 128
          %s392 = scalar_lea.vmem [#allocation4], %s391
          %s393 = smul.u32 16, %s37
          %s395 = ssub.s32 2048, 2048
          %396 = vsyncadd %s389, %s395
          %s397 = smul.addr %s393, 2
          %s398 = sadd.s32 %s38, %s397
          %s399 = smul.addr %s398, 128
          %s400 = scalar_lea.hbm %s0, %s399
          %s401 = sshll.u32 %s392, 4
          %s402 = int_to_ptr.vmem [resolvable:$true] %s401
          %407 = dma.hbm_to_vmem [thread:$0]  %s400, 2048, %s402, %s389, 256, 128, 8
        $region52: #{gcn_v_forward.1} parent=47 // pred_fallthru
          _
        // Predicated region
        $region53: #{gcn_v_forward.1} parent=47 // pred_check
          %p408 = pneg %p90
        $region54: #{gcn_v_forward.1} parent=47 // pred_check_branch
          %410 = sbr.rel (%p408) target = $region56
        $region55: #{gcn_v_forward.1} parent=47 // pred_region
          %s411 = smul.u32 16, %s38
          %p412 = scmp.lt.s32.totalorder %s411, 31
          %s413 = scalar_select %p412, %s411, 31
          %s414 = smul.addr %s413, 8
          %s415 = scalar_lea.vmem %s1, %s414
          %s416 = smul.u32 16, %s38
        $region56: #{gcn_v_forward.1} parent=47 // pred_fallthru
          _
        // Predicated region
        $region57: #{gcn_v_forward.1} parent=47 // pred_check
          %p417 = pneg %p116
        $region58: #{gcn_v_forward.1} parent=47 // pred_check_branch
          %419 = sbr.rel (%p417) target = $region60
        $region59: #{gcn_v_forward.1} parent=47 // pred_region
          %s420 = smul.u32 16, %s37
          %p421 = scmp.lt.s32.totalorder %s420, 31
          %s422 = scalar_select %p421, %s420, 31
          %s423 = smul.addr %s422, 8
          %s424 = scalar_lea.vmem %s2, %s423
          %s425 = smul.u32 16, %s37
        $region60: #{gcn_v_forward.1} parent=47 // pred_fallthru
          _
      $region48: #{gcn_v_forward.1} parent=5 // pred_fallthru
        _
      %p426 = scmp.le.s32.totalorder 1, %s30
      %p427 = scmp.lt.s32.totalorder %s30, 5
      %p428 = pnand %p426, %p427
      %p429 = pneg %p428
      // Predicated region
      $region61: #{gcn_v_forward.1} parent=5 // pred_check
        _
      $region62: #{gcn_v_forward.1} parent=5 // pred_check_branch
        %431 = sbr.rel (%p428) target = $region64
      $region63: #{gcn_v_forward.1} parent=5 // pred_region
        %s432 = ssub.s32 %s30, 1
        %s433 = sand.u32 %s57, 1
        %s434 = scalar_lea.sflag [#allocation5], %s433
        %s435 = sand.u32 %s57, 1
        %s436 = smul.addr %s435, 128
        %s437 = scalar_lea.vmem [#allocation4], %s436
        // Predicated region
        $region65: #{gcn_v_forward.1} parent=63 // pred_check
          %p438 = pneg %p70
        $region66: #{gcn_v_forward.1} parent=63 // pred_check_branch
          %440 = sbr.rel (%p438) target = $region68
        $region67: #{gcn_v_forward.1} parent=63 // pred_region
          %441 = dma.done %s434, 2048
        $region68: #{gcn_v_forward.1} parent=63 // pred_fallthru
          _
        %s442 = sand.u32 %s57, 1
        %s443 = scalar_lea.sflag [#allocation5], %s442
        %s444 = sand.u32 %s57, 1
        %s445 = smul.addr %s444, 128
        %s446 = scalar_lea.vmem [#allocation4], %s445
        %p447 = pneg %p70
        %p448 = pneg %p67
        %s449 = smul.u32 16, %s40
        %p450 = scmp.lt.s32.totalorder %s449, 31
        %s451 = scalar_select %p450, %s449, 31
        %s452 = smul.addr %s451, 8
        %s453 = scalar_lea.vmem %s1, %s452
        %p454 = pneg %p96
        %p455 = pneg %p93
        %s456 = smul.u32 16, %s39
        %p457 = scmp.lt.s32.totalorder %s456, 31
        %s458 = scalar_select %p457, %s456, 31
        %s459 = smul.addr %s458, 8
        %s460 = scalar_lea.vmem %s2, %s459
        %p461 = pneg %p122
        %p462 = pneg %p119
        %p463 = pneg %p143
        %p464 = pneg %p140
        %p465 = pneg %p164
        %p466 = pneg %p161
        %p467 = pneg %p185
        %p468 = pneg %p182
        %p469 = pneg %p206
        %p470 = pneg %p203
        %p471 = pneg %p227
        %p472 = pneg %p224
        %p473 = pneg %p248
        %p474 = pneg %p245
        %p475 = pneg %p269
        %p476 = pneg %p266
        %p477 = pneg %p290
        %p478 = pneg %p287
        %p479 = pneg %p316
        %p480 = pneg %p313
        %s481 = sand.u32 %s303, 1
        %s482 = scalar_lea.sflag [#allocation6], %s481
        %s483 = sand.u32 %s303, 1
        %s484 = scalar_lea.vmem [#allocation7], %s483
        %p485 = pneg %p342
        %p486 = pneg %p339
        %s487 = sand.u32 %s329, 1
        %s488 = scalar_lea.sflag [#allocation9], %s487
        %s489 = sand.u32 %s329, 1
        %s490 = smul.addr %s489, 128
        %s491 = scalar_lea.vmem [#allocation8], %s490
        %s492 = smul.u32 16, %s39
        %s493 = smul.u32 16, %s40
        %p494 = scmp.lt.s32.totalorder %s493, 31
        %s495 = scalar_select %p494, %s493, 31
        %s496 = smul.addr %s495, 8
        %s497 = scalar_lea.vmem %s1, %s496
        %s498 = smul.u32 16, %s40
        %s499 = smul.u32 16, %s39
        %p500 = scmp.lt.s32.totalorder %s499, 31
        %s501 = scalar_select %p500, %s499, 31
        %s502 = smul.addr %s501, 8
        %s503 = scalar_lea.vmem %s2, %s502
        %s504 = smul.u32 16, %s39
        %s505 = smul.u32 16, %s39
        %p506 = scmp.eq.s32.totalorder %s40, 0
        // Predicated region
        $region69: #{gcn_v_forward.1} parent=63 // pred_check
          %p507 = pneg %p506
        $region70: #{gcn_v_forward.1} parent=63 // pred_check_branch
          %509 = sbr.rel (%p507) target = $region72
        $region71: #{gcn_v_forward.1} parent=63 // pred_region
          %510 = vst [vmem:[#allocation2] sm:$0xff] 0.0
          %511 = vst [vmem:[#allocation2 + $0x8] sm:$0xff] 0.0
          %512 = vst [vmem:[#allocation2 + $0x10] sm:$0xff] 0.0
          %513 = vst [vmem:[#allocation2 + $0x18] sm:$0xff] 0.0
          %514 = vst [vmem:[#allocation2 + $0x20] sm:$0xff] 0.0
          %515 = vst [vmem:[#allocation2 + $0x28] sm:$0xff] 0.0
          %516 = vst [vmem:[#allocation2 + $0x30] sm:$0xff] 0.0
          %517 = vst [vmem:[#allocation2 + $0x38] sm:$0xff] 0.0
          %518 = vst [vmem:[#allocation2 + $0x40] sm:$0xff] 0.0
          %519 = vst [vmem:[#allocation2 + $0x48] sm:$0xff] 0.0
          %520 = vst [vmem:[#allocation2 + $0x50] sm:$0xff] 0.0
          %521 = vst [vmem:[#allocation2 + $0x58] sm:$0xff] 0.0
          %522 = vst [vmem:[#allocation2 + $0x60] sm:$0xff] 0.0
          %523 = vst [vmem:[#allocation2 + $0x68] sm:$0xff] 0.0
          %524 = vst [vmem:[#allocation2 + $0x70] sm:$0xff] 0.0
          %525 = vst [vmem:[#allocation2 + $0x78] sm:$0xff] 0.0
        $region72: #{gcn_v_forward.1} parent=63 // pred_fallthru
          _
        %v526 = vld [vmem:[#allocation2] sm:$0xff]
        %v527 = vld [vmem:[#allocation2 + $0x8] sm:$0xff]
        %v528 = vld [vmem:[#allocation2 + $0x10] sm:$0xff]
        %v529 = vld [vmem:[#allocation2 + $0x18] sm:$0xff]
        %v530 = vld [vmem:[#allocation2 + $0x20] sm:$0xff]
        %v531 = vld [vmem:[#allocation2 + $0x28] sm:$0xff]
        %v532 = vld [vmem:[#allocation2 + $0x30] sm:$0xff]
        %v533 = vld [vmem:[#allocation2 + $0x38] sm:$0xff]
        %v534 = vld [vmem:[#allocation2 + $0x40] sm:$0xff]
        %v535 = vld [vmem:[#allocation2 + $0x48] sm:$0xff]
        %v536 = vld [vmem:[#allocation2 + $0x50] sm:$0xff]
        %v537 = vld [vmem:[#allocation2 + $0x58] sm:$0xff]
        %v538 = vld [vmem:[#allocation2 + $0x60] sm:$0xff]
        %v539 = vld [vmem:[#allocation2 + $0x68] sm:$0xff]
        %v540 = vld [vmem:[#allocation2 + $0x70] sm:$0xff]
        %v541 = vld [vmem:[#allocation2 + $0x78] sm:$0xff]
        %v542 = vld [vmem:[%s437] sm:$0xff]
        %v543 = vld [vmem:[%s437 + $0x8] sm:$0xff]
        %v544 = vld [vmem:[%s437 + $0x10] sm:$0xff]
        %v545 = vld [vmem:[%s437 + $0x18] sm:$0xff]
        %v546 = vld [vmem:[%s437 + $0x20] sm:$0xff]
        %v547 = vld [vmem:[%s437 + $0x28] sm:$0xff]
        %v548 = vld [vmem:[%s437 + $0x30] sm:$0xff]
        %v549 = vld [vmem:[%s437 + $0x38] sm:$0xff]
        %v550 = vld [vmem:[%s437 + $0x40] sm:$0xff]
        %v551 = vld [vmem:[%s437 + $0x48] sm:$0xff]
        %v552 = vld [vmem:[%s437 + $0x50] sm:$0xff]
        %v553 = vld [vmem:[%s437 + $0x58] sm:$0xff]
        %v554 = vld [vmem:[%s437 + $0x60] sm:$0xff]
        %v555 = vld [vmem:[%s437 + $0x68] sm:$0xff]
        %v556 = vld [vmem:[%s437 + $0x70] sm:$0xff]
        %v557 = vld [vmem:[%s437 + $0x78] sm:$0xff]
        %v558 = vld [vmem:[%s497] sm:$0xff]
        %v559 = vld [vmem:[%s497 + $0x8] sm:$0xff]
        %v560 = vld [vmem:[%s497 + $0x10] sm:$0xff]
        %v561 = vld [vmem:[%s497 + $0x18] sm:$0xff]
        %v562 = vld [vmem:[%s497 + $0x20] sm:$0xff]
        %v563 = vld [vmem:[%s497 + $0x28] sm:$0xff]
        %v564 = vld [vmem:[%s497 + $0x30] sm:$0xff]
        %v565 = vld [vmem:[%s497 + $0x38] sm:$0xff]
        %v566 = vld [vmem:[%s497 + $0x40] sm:$0xff]
        %v567 = vld [vmem:[%s497 + $0x48] sm:$0xff]
        %v568 = vld [vmem:[%s497 + $0x50] sm:$0xff]
        %v569 = vld [vmem:[%s497 + $0x58] sm:$0xff]
        %v570 = vld [vmem:[%s497 + $0x60] sm:$0xff]
        %v571 = vld [vmem:[%s497 + $0x68] sm:$0xff]
        %v572 = vld [vmem:[%s497 + $0x70] sm:$0xff]
        %v573 = vld [vmem:[%s497 + $0x78] sm:$0xff]
        %574 = vmatprep.subr.mxu0 0.0
        %575 = vmatpush1.msra.mxu0 %v573
        %576 = vmatprep.subr.mxu0 0.0
        %577 = vmatpush1.msra.mxu0 %v572
        %578 = vmatprep.subr.mxu0 0.0
        %579 = vmatpush1.msra.mxu0 %v571
        %580 = vmatprep.subr.mxu0 0.0
        %581 = vmatpush1.msra.mxu0 %v570
        %582 = vmatprep.subr.mxu0 0.0
        %583 = vmatpush1.msra.mxu0 %v569
        %584 = vmatprep.subr.mxu0 0.0
        %585 = vmatpush1.msra.mxu0 %v568
        %586 = vmatprep.subr.mxu0 0.0
        %587 = vmatpush1.msra.mxu0 %v567
        %588 = vmatprep.subr.mxu0 0.0
        %589 = vmatpush1.msra.mxu0 %v566
        %590 = vmatprep.subr.mxu0 0.0
        %591 = vmatpush1.msra.mxu0 %v565
        %592 = vmatprep.subr.mxu0 0.0
        %593 = vmatpush1.msra.mxu0 %v564
        %594 = vmatprep.subr.mxu0 0.0
        %595 = vmatpush1.msra.mxu0 %v563
        %596 = vmatprep.subr.mxu0 0.0
        %597 = vmatpush1.msra.mxu0 %v562
        %598 = vmatprep.subr.mxu0 0.0
        %599 = vmatpush1.msra.mxu0 %v561
        %600 = vmatprep.subr.mxu0 0.0
        %601 = vmatpush1.msra.mxu0 %v560
        %602 = vmatprep.subr.mxu0 0.0
        %603 = vmatpush1.msra.mxu0 %v559
        %604 = vmatprep.subr.mxu0 0.0
        %605 = vmatpush1.msra.mxu0 %v558
        %606 = vmatprep.subr.mxu0 0.0
        %607 = vmatpush2.msra.mxu0 0.0
        %608 = vmatprep.subr.mxu0 0.0
        %609 = vmatpush2.msra.mxu0 0.0
        %610 = vmatprep.subr.mxu0 0.0
        %611 = vmatpush2.msra.mxu0 0.0
        %612 = vmatprep.subr.mxu0 0.0
        %613 = vmatpush2.msra.mxu0 0.0
        %614 = vmatprep.subr.mxu0 0.0
        %615 = vmatpush2.msra.mxu0 0.0
        %616 = vmatprep.subr.mxu0 0.0
        %617 = vmatpush2.msra.mxu0 0.0
        %618 = vmatprep.subr.mxu0 0.0
        %619 = vmatpush2.msra.mxu0 0.0
        %620 = vmatprep.subr.mxu0 0.0
        %621 = vmatpush2.msra.mxu0 0.0
        %622 = vmatprep.subr.mxu0 0.0
        %623 = vmatpush2.msra.mxu0 0.0
        %624 = vmatprep.subr.mxu0 0.0
        %625 = vmatpush2.msra.mxu0 0.0
        %626 = vmatprep.subr.mxu0 0.0
        %627 = vmatpush2.msra.mxu0 0.0
        %628 = vmatprep.subr.mxu0 0.0
        %629 = vmatpush2.msra.mxu0 0.0
        %630 = vmatprep.subr.mxu0 0.0
        %631 = vmatpush2.msra.mxu0 0.0
        %632 = vmatprep.subr.mxu0 0.0
        %633 = vmatpush2.msra.mxu0 0.0
        %634 = vmatprep.subr.mxu0 0.0
        %635 = vmatpush2.msra.mxu0 0.0
        %636 = vmatprep.subr.mxu0 0.0
        %637 = vmatpush2.msra.mxu0 0.0
        %638 = vmatprep.mubr.f32.mxu0 0.0
        %639 = vmatmul.mubr.f32.gmra.mxu0 %v542
        %v640 = vpop.f32.mrf.mxu0
        %v641 = vadd.f32 0.0, %v640
        %v642 = vpop.f32.mrf.mxu0
        %643 = vmatprep.mubr.f32.mxu0 0.0
        %644 = vmatmul.mubr.f32.gmra.mxu0 %v543
        %v645 = vpop.f32.mrf.mxu0
        %v646 = vadd.f32 0.0, %v645
        %v647 = vpop.f32.mrf.mxu0
        %648 = vmatprep.mubr.f32.mxu0 0.0
        %649 = vmatmul.mubr.f32.gmra.mxu0 %v544
        %v650 = vpop.f32.mrf.mxu0
        %v651 = vadd.f32 0.0, %v650
        %v652 = vpop.f32.mrf.mxu0
        %653 = vmatprep.mubr.f32.mxu0 0.0
        %654 = vmatmul.mubr.f32.gmra.mxu0 %v545
        %v655 = vpop.f32.mrf.mxu0
        %v656 = vadd.f32 0.0, %v655
        %v657 = vpop.f32.mrf.mxu0
        %658 = vmatprep.mubr.f32.mxu0 0.0
        %659 = vmatmul.mubr.f32.gmra.mxu0 %v546
        %v660 = vpop.f32.mrf.mxu0
        %v661 = vadd.f32 0.0, %v660
        %v662 = vpop.f32.mrf.mxu0
        %663 = vmatprep.mubr.f32.mxu0 0.0
        %664 = vmatmul.mubr.f32.gmra.mxu0 %v547
        %v665 = vpop.f32.mrf.mxu0
        %v666 = vadd.f32 0.0, %v665
        %v667 = vpop.f32.mrf.mxu0
        %668 = vmatprep.mubr.f32.mxu0 0.0
        %669 = vmatmul.mubr.f32.gmra.mxu0 %v548
        %v670 = vpop.f32.mrf.mxu0
        %v671 = vadd.f32 0.0, %v670
        %v672 = vpop.f32.mrf.mxu0
        %673 = vmatprep.mubr.f32.mxu0 0.0
        %674 = vmatmul.mubr.f32.gmra.mxu0 %v549
        %v675 = vpop.f32.mrf.mxu0
        %v676 = vadd.f32 0.0, %v675
        %v677 = vpop.f32.mrf.mxu0
        %678 = vmatprep.mubr.f32.mxu0 0.0
        %679 = vmatmul.mubr.f32.gmra.mxu0 %v550
        %v680 = vpop.f32.mrf.mxu0
        %v681 = vadd.f32 0.0, %v680
        %v682 = vpop.f32.mrf.mxu0
        %683 = vmatprep.mubr.f32.mxu0 0.0
        %684 = vmatmul.mubr.f32.gmra.mxu0 %v551
        %v685 = vpop.f32.mrf.mxu0
        %v686 = vadd.f32 0.0, %v685
        %v687 = vpop.f32.mrf.mxu0
        %688 = vmatprep.mubr.f32.mxu0 0.0
        %689 = vmatmul.mubr.f32.gmra.mxu0 %v552
        %v690 = vpop.f32.mrf.mxu0
        %v691 = vadd.f32 0.0, %v690
        %v692 = vpop.f32.mrf.mxu0
        %693 = vmatprep.mubr.f32.mxu0 0.0
        %694 = vmatmul.mubr.f32.gmra.mxu0 %v553
        %v695 = vpop.f32.mrf.mxu0
        %v696 = vadd.f32 0.0, %v695
        %v697 = vpop.f32.mrf.mxu0
        %698 = vmatprep.mubr.f32.mxu0 0.0
        %699 = vmatmul.mubr.f32.gmra.mxu0 %v554
        %v700 = vpop.f32.mrf.mxu0
        %v701 = vadd.f32 0.0, %v700
        %v702 = vpop.f32.mrf.mxu0
        %703 = vmatprep.mubr.f32.mxu0 0.0
        %704 = vmatmul.mubr.f32.gmra.mxu0 %v555
        %v705 = vpop.f32.mrf.mxu0
        %v706 = vadd.f32 0.0, %v705
        %v707 = vpop.f32.mrf.mxu0
        %708 = vmatprep.mubr.f32.mxu0 0.0
        %709 = vmatmul.mubr.f32.gmra.mxu0 %v556
        %v710 = vpop.f32.mrf.mxu0
        %v711 = vadd.f32 0.0, %v710
        %v712 = vpop.f32.mrf.mxu0
        %713 = vmatprep.mubr.f32.mxu0 0.0
        %714 = vmatmul.mubr.f32.gmra.mxu0 %v557
        %v715 = vpop.f32.mrf.mxu0
        %v716 = vadd.f32 0.0, %v715
        %v717 = vpop.f32.mrf.mxu0
        %718 = vdwg.mxu0
        %v719 = vadd.f32 %v526, %v641
        %v720 = vadd.f32 %v527, %v646
        %v721 = vadd.f32 %v528, %v651
        %v722 = vadd.f32 %v529, %v656
        %v723 = vadd.f32 %v530, %v661
        %v724 = vadd.f32 %v531, %v666
        %v725 = vadd.f32 %v532, %v671
        %v726 = vadd.f32 %v533, %v676
        %v727 = vadd.f32 %v534, %v681
        %v728 = vadd.f32 %v535, %v686
        %v729 = vadd.f32 %v536, %v691
        %v730 = vadd.f32 %v537, %v696
        %v731 = vadd.f32 %v538, %v701
        %v732 = vadd.f32 %v539, %v706
        %v733 = vadd.f32 %v540, %v711
        %v734 = vadd.f32 %v541, %v716
        %735 = vst [vmem:[#allocation2] sm:$0xff] %v719
        %736 = vst [vmem:[#allocation2 + $0x8] sm:$0xff] %v720
        %737 = vst [vmem:[#allocation2 + $0x10] sm:$0xff] %v721
        %738 = vst [vmem:[#allocation2 + $0x18] sm:$0xff] %v722
        %739 = vst [vmem:[#allocation2 + $0x20] sm:$0xff] %v723
        %740 = vst [vmem:[#allocation2 + $0x28] sm:$0xff] %v724
        %741 = vst [vmem:[#allocation2 + $0x30] sm:$0xff] %v725
        %742 = vst [vmem:[#allocation2 + $0x38] sm:$0xff] %v726
        %743 = vst [vmem:[#allocation2 + $0x40] sm:$0xff] %v727
        %744 = vst [vmem:[#allocation2 + $0x48] sm:$0xff] %v728
        %745 = vst [vmem:[#allocation2 + $0x50] sm:$0xff] %v729
        %746 = vst [vmem:[#allocation2 + $0x58] sm:$0xff] %v730
        %747 = vst [vmem:[#allocation2 + $0x60] sm:$0xff] %v731
        %748 = vst [vmem:[#allocation2 + $0x68] sm:$0xff] %v732
        %749 = vst [vmem:[#allocation2 + $0x70] sm:$0xff] %v733
        %750 = vst [vmem:[#allocation2 + $0x78] sm:$0xff] %v734
        %p751 = scmp.eq.s32.totalorder %s40, 1
        // Predicated region
        $region73: #{gcn_v_forward.1} parent=63 // pred_check
          %p752 = pneg %p751
        $region74: #{gcn_v_forward.1} parent=63 // pred_check_branch
          %754 = sbr.rel (%p752) target = $region76
        $region75: #{gcn_v_forward.1} parent=63 // pred_region
          %v755 = vld [vmem:[#allocation2] sm:$0xff]
          %v756 = vld [vmem:[#allocation2 + $0x8] sm:$0xff]
          %v757 = vld [vmem:[#allocation2 + $0x10] sm:$0xff]
          %v758 = vld [vmem:[#allocation2 + $0x18] sm:$0xff]
          %v759 = vld [vmem:[#allocation2 + $0x20] sm:$0xff]
          %v760 = vld [vmem:[#allocation2 + $0x28] sm:$0xff]
          %v761 = vld [vmem:[#allocation2 + $0x30] sm:$0xff]
          %v762 = vld [vmem:[#allocation2 + $0x38] sm:$0xff]
          %v763 = vld [vmem:[#allocation2 + $0x40] sm:$0xff]
          %v764 = vld [vmem:[#allocation2 + $0x48] sm:$0xff]
          %v765 = vld [vmem:[#allocation2 + $0x50] sm:$0xff]
          %v766 = vld [vmem:[#allocation2 + $0x58] sm:$0xff]
          %v767 = vld [vmem:[#allocation2 + $0x60] sm:$0xff]
          %v768 = vld [vmem:[#allocation2 + $0x68] sm:$0xff]
          %v769 = vld [vmem:[#allocation2 + $0x70] sm:$0xff]
          %v770 = vld [vmem:[#allocation2 + $0x78] sm:$0xff]
          %v771 = vld [vmem:[%s503] sm:$0xff]
          %v772 = vld [vmem:[%s503 + $0x8] sm:$0xff]
          %v773 = vld [vmem:[%s503 + $0x10] sm:$0xff]
          %v774 = vld [vmem:[%s503 + $0x18] sm:$0xff]
          %v775 = vld [vmem:[%s503 + $0x20] sm:$0xff]
          %v776 = vld [vmem:[%s503 + $0x28] sm:$0xff]
          %v777 = vld [vmem:[%s503 + $0x30] sm:$0xff]
          %v778 = vld [vmem:[%s503 + $0x38] sm:$0xff]
          %v779 = vld [vmem:[%s503 + $0x40] sm:$0xff]
          %v780 = vld [vmem:[%s503 + $0x48] sm:$0xff]
          %v781 = vld [vmem:[%s503 + $0x50] sm:$0xff]
          %v782 = vld [vmem:[%s503 + $0x58] sm:$0xff]
          %v783 = vld [vmem:[%s503 + $0x60] sm:$0xff]
          %v784 = vld [vmem:[%s503 + $0x68] sm:$0xff]
          %v785 = vld [vmem:[%s503 + $0x70] sm:$0xff]
          %v786 = vld [vmem:[%s503 + $0x78] sm:$0xff]
          %v787 = vld [vmem:[%s3] sm:$0xff]
          %v788 = vld [vmem:[%s3 + $0x8] sm:$0xff]
          %v789 = vld [vmem:[%s3 + $0x10] sm:$0xff]
          %v790 = vld [vmem:[%s3 + $0x18] sm:$0xff]
          %v791 = vld [vmem:[%s3 + $0x20] sm:$0xff]
          %v792 = vld [vmem:[%s3 + $0x28] sm:$0xff]
          %v793 = vld [vmem:[%s3 + $0x30] sm:$0xff]
          %v794 = vld [vmem:[%s3 + $0x38] sm:$0xff]
          %v795 = vld [vmem:[%s3 + $0x40] sm:$0xff]
          %v796 = vld [vmem:[%s3 + $0x48] sm:$0xff]
          %v797 = vld [vmem:[%s3 + $0x50] sm:$0xff]
          %v798 = vld [vmem:[%s3 + $0x58] sm:$0xff]
          %v799 = vld [vmem:[%s3 + $0x60] sm:$0xff]
          %v800 = vld [vmem:[%s3 + $0x68] sm:$0xff]
          %v801 = vld [vmem:[%s3 + $0x70] sm:$0xff]
          %v802 = vld [vmem:[%s3 + $0x78] sm:$0xff]
          %v803 = vld [vmem:[%s4] sm:$0xff]
          %v804 = vld [vmem:[%s4 + $0x8] sm:$0xff]
          %v805 = vld [vmem:[%s4 + $0x10] sm:$0xff]
          %v806 = vld [vmem:[%s4 + $0x18] sm:$0xff]
          %v807 = vld [vmem:[%s4 + $0x20] sm:$0xff]
          %v808 = vld [vmem:[%s4 + $0x28] sm:$0xff]
          %v809 = vld [vmem:[%s4 + $0x30] sm:$0xff]
          %v810 = vld [vmem:[%s4 + $0x38] sm:$0xff]
          %v811 = vld [vmem:[%s4 + $0x40] sm:$0xff]
          %v812 = vld [vmem:[%s4 + $0x48] sm:$0xff]
          %v813 = vld [vmem:[%s4 + $0x50] sm:$0xff]
          %v814 = vld [vmem:[%s4 + $0x58] sm:$0xff]
          %v815 = vld [vmem:[%s4 + $0x60] sm:$0xff]
          %v816 = vld [vmem:[%s4 + $0x68] sm:$0xff]
          %v817 = vld [vmem:[%s4 + $0x70] sm:$0xff]
          %v818 = vld [vmem:[%s4 + $0x78] sm:$0xff]
          %819 = vmatprep.subr.mxu0 0.0
          %820 = vmatpush1.msra.mxu0 %v818
          %821 = vmatprep.subr.mxu0 0.0
          %822 = vmatpush1.msra.mxu0 %v817
          %823 = vmatprep.subr.mxu0 0.0
          %824 = vmatpush1.msra.mxu0 %v816
          %825 = vmatprep.subr.mxu0 0.0
          %826 = vmatpush1.msra.mxu0 %v815
          %827 = vmatprep.subr.mxu0 0.0
          %828 = vmatpush1.msra.mxu0 %v814
          %829 = vmatprep.subr.mxu0 0.0
          %830 = vmatpush1.msra.mxu0 %v813
          %831 = vmatprep.subr.mxu0 0.0
          %832 = vmatpush1.msra.mxu0 %v812
          %833 = vmatprep.subr.mxu0 0.0
          %834 = vmatpush1.msra.mxu0 %v811
          %835 = vmatprep.subr.mxu0 0.0
          %836 = vmatpush1.msra.mxu0 %v810
          %837 = vmatprep.subr.mxu0 0.0
          %838 = vmatpush1.msra.mxu0 %v809
          %839 = vmatprep.subr.mxu0 0.0
          %840 = vmatpush1.msra.mxu0 %v808
          %841 = vmatprep.subr.mxu0 0.0
          %842 = vmatpush1.msra.mxu0 %v807
          %843 = vmatprep.subr.mxu0 0.0
          %844 = vmatpush1.msra.mxu0 %v806
          %845 = vmatprep.subr.mxu0 0.0
          %846 = vmatpush1.msra.mxu0 %v805
          %847 = vmatprep.subr.mxu0 0.0
          %848 = vmatpush1.msra.mxu0 %v804
          %849 = vmatprep.subr.mxu0 0.0
          %850 = vmatpush1.msra.mxu0 %v803
          %851 = vmatprep.subr.mxu0 0.0
          %852 = vmatpush2.msra.mxu0 0.0
          %853 = vmatprep.subr.mxu0 0.0
          %854 = vmatpush2.msra.mxu0 0.0
          %855 = vmatprep.subr.mxu0 0.0
          %856 = vmatpush2.msra.mxu0 0.0
          %857 = vmatprep.subr.mxu0 0.0
          %858 = vmatpush2.msra.mxu0 0.0
          %859 = vmatprep.subr.mxu0 0.0
          %860 = vmatpush2.msra.mxu0 0.0
          %861 = vmatprep.subr.mxu0 0.0
          %862 = vmatpush2.msra.mxu0 0.0
          %863 = vmatprep.subr.mxu0 0.0
          %864 = vmatpush2.msra.mxu0 0.0
          %865 = vmatprep.subr.mxu0 0.0
          %866 = vmatpush2.msra.mxu0 0.0
          %867 = vmatprep.subr.mxu0 0.0
          %868 = vmatpush2.msra.mxu0 0.0
          %869 = vmatprep.subr.mxu0 0.0
          %870 = vmatpush2.msra.mxu0 0.0
          %871 = vmatprep.subr.mxu0 0.0
          %872 = vmatpush2.msra.mxu0 0.0
          %873 = vmatprep.subr.mxu0 0.0
          %874 = vmatpush2.msra.mxu0 0.0
          %875 = vmatprep.subr.mxu0 0.0
          %876 = vmatpush2.msra.mxu0 0.0
          %877 = vmatprep.subr.mxu0 0.0
          %878 = vmatpush2.msra.mxu0 0.0
          %879 = vmatprep.subr.mxu0 0.0
          %880 = vmatpush2.msra.mxu0 0.0
          %881 = vmatprep.subr.mxu0 0.0
          %882 = vmatpush2.msra.mxu0 0.0
          %883 = vmatprep.mubr.f32.mxu0 0.0
          %884 = vmatmul.mubr.f32.gmra.mxu0 %v755
          %v885 = vpop.f32.mrf.mxu0
          %v886 = vadd.f32 0.0, %v885
          %v887 = vpop.f32.mrf.mxu0
          %888 = vmatprep.mubr.f32.mxu0 0.0
          %889 = vmatmul.mubr.f32.gmra.mxu0 %v756
          %v890 = vpop.f32.mrf.mxu0
          %v891 = vadd.f32 0.0, %v890
          %v892 = vpop.f32.mrf.mxu0
          %893 = vmatprep.mubr.f32.mxu0 0.0
          %894 = vmatmul.mubr.f32.gmra.mxu0 %v757
          %v895 = vpop.f32.mrf.mxu0
          %v896 = vadd.f32 0.0, %v895
          %v897 = vpop.f32.mrf.mxu0
          %898 = vmatprep.mubr.f32.mxu0 0.0
          %899 = vmatmul.mubr.f32.gmra.mxu0 %v758
          %v900 = vpop.f32.mrf.mxu0
          %v901 = vadd.f32 0.0, %v900
          %v902 = vpop.f32.mrf.mxu0
          %903 = vmatprep.mubr.f32.mxu0 0.0
          %904 = vmatmul.mubr.f32.gmra.mxu0 %v759
          %v905 = vpop.f32.mrf.mxu0
          %v906 = vadd.f32 0.0, %v905
          %v907 = vpop.f32.mrf.mxu0
          %908 = vmatprep.mubr.f32.mxu0 0.0
          %909 = vmatmul.mubr.f32.gmra.mxu0 %v760
          %v910 = vpop.f32.mrf.mxu0
          %v911 = vadd.f32 0.0, %v910
          %v912 = vpop.f32.mrf.mxu0
          %913 = vmatprep.mubr.f32.mxu0 0.0
          %914 = vmatmul.mubr.f32.gmra.mxu0 %v761
          %v915 = vpop.f32.mrf.mxu0
          %v916 = vadd.f32 0.0, %v915
          %v917 = vpop.f32.mrf.mxu0
          %918 = vmatprep.mubr.f32.mxu0 0.0
          %919 = vmatmul.mubr.f32.gmra.mxu0 %v762
          %v920 = vpop.f32.mrf.mxu0
          %v921 = vadd.f32 0.0, %v920
          %v922 = vpop.f32.mrf.mxu0
          %923 = vmatprep.mubr.f32.mxu0 0.0
          %924 = vmatmul.mubr.f32.gmra.mxu0 %v763
          %v925 = vpop.f32.mrf.mxu0
          %v926 = vadd.f32 0.0, %v925
          %v927 = vpop.f32.mrf.mxu0
          %928 = vmatprep.mubr.f32.mxu0 0.0
          %929 = vmatmul.mubr.f32.gmra.mxu0 %v764
          %v930 = vpop.f32.mrf.mxu0
          %v931 = vadd.f32 0.0, %v930
          %v932 = vpop.f32.mrf.mxu0
          %933 = vmatprep.mubr.f32.mxu0 0.0
          %934 = vmatmul.mubr.f32.gmra.mxu0 %v765
          %v935 = vpop.f32.mrf.mxu0
          %v936 = vadd.f32 0.0, %v935
          %v937 = vpop.f32.mrf.mxu0
          %938 = vmatprep.mubr.f32.mxu0 0.0
          %939 = vmatmul.mubr.f32.gmra.mxu0 %v766
          %v940 = vpop.f32.mrf.mxu0
          %v941 = vadd.f32 0.0, %v940
          %v942 = vpop.f32.mrf.mxu0
          %943 = vmatprep.mubr.f32.mxu0 0.0
          %944 = vmatmul.mubr.f32.gmra.mxu0 %v767
          %v945 = vpop.f32.mrf.mxu0
          %v946 = vadd.f32 0.0, %v945
          %v947 = vpop.f32.mrf.mxu0
          %948 = vmatprep.mubr.f32.mxu0 0.0
          %949 = vmatmul.mubr.f32.gmra.mxu0 %v768
          %v950 = vpop.f32.mrf.mxu0
          %v951 = vadd.f32 0.0, %v950
          %v952 = vpop.f32.mrf.mxu0
          %953 = vmatprep.mubr.f32.mxu0 0.0
          %954 = vmatmul.mubr.f32.gmra.mxu0 %v769
          %v955 = vpop.f32.mrf.mxu0
          %v956 = vadd.f32 0.0, %v955
          %v957 = vpop.f32.mrf.mxu0
          %958 = vmatprep.mubr.f32.mxu0 0.0
          %959 = vmatmul.mubr.f32.gmra.mxu0 %v770
          %v960 = vpop.f32.mrf.mxu0
          %v961 = vadd.f32 0.0, %v960
          %v962 = vpop.f32.mrf.mxu0
          %963 = vdwg.mxu0
          %964 = vmatprep.subr.mxu0 0.0
          %965 = vmatpush1.msra.mxu0 %v802
          %966 = vmatprep.subr.mxu0 0.0
          %967 = vmatpush1.msra.mxu0 %v801
          %968 = vmatprep.subr.mxu0 0.0
          %969 = vmatpush1.msra.mxu0 %v800
          %970 = vmatprep.subr.mxu0 0.0
          %971 = vmatpush1.msra.mxu0 %v799
          %972 = vmatprep.subr.mxu0 0.0
          %973 = vmatpush1.msra.mxu0 %v798
          %974 = vmatprep.subr.mxu0 0.0
          %975 = vmatpush1.msra.mxu0 %v797
          %976 = vmatprep.subr.mxu0 0.0
          %977 = vmatpush1.msra.mxu0 %v796
          %978 = vmatprep.subr.mxu0 0.0
          %979 = vmatpush1.msra.mxu0 %v795
          %980 = vmatprep.subr.mxu0 0.0
          %981 = vmatpush1.msra.mxu0 %v794
          %982 = vmatprep.subr.mxu0 0.0
          %983 = vmatpush1.msra.mxu0 %v793
          %984 = vmatprep.subr.mxu0 0.0
          %985 = vmatpush1.msra.mxu0 %v792
          %986 = vmatprep.subr.mxu0 0.0
          %987 = vmatpush1.msra.mxu0 %v791
          %988 = vmatprep.subr.mxu0 0.0
          %989 = vmatpush1.msra.mxu0 %v790
          %990 = vmatprep.subr.mxu0 0.0
          %991 = vmatpush1.msra.mxu0 %v789
          %992 = vmatprep.subr.mxu0 0.0
          %993 = vmatpush1.msra.mxu0 %v788
          %994 = vmatprep.subr.mxu0 0.0
          %995 = vmatpush1.msra.mxu0 %v787
          %996 = vmatprep.subr.mxu0 0.0
          %997 = vmatpush2.msra.mxu0 0.0
          %998 = vmatprep.subr.mxu0 0.0
          %999 = vmatpush2.msra.mxu0 0.0
          %1000 = vmatprep.subr.mxu0 0.0
          %1001 = vmatpush2.msra.mxu0 0.0
          %1002 = vmatprep.subr.mxu0 0.0
          %1003 = vmatpush2.msra.mxu0 0.0
          %1004 = vmatprep.subr.mxu0 0.0
          %1005 = vmatpush2.msra.mxu0 0.0
          %1006 = vmatprep.subr.mxu0 0.0
          %1007 = vmatpush2.msra.mxu0 0.0
          %1008 = vmatprep.subr.mxu0 0.0
          %1009 = vmatpush2.msra.mxu0 0.0
          %1010 = vmatprep.subr.mxu0 0.0
          %1011 = vmatpush2.msra.mxu0 0.0
          %1012 = vmatprep.subr.mxu0 0.0
          %1013 = vmatpush2.msra.mxu0 0.0
          %1014 = vmatprep.subr.mxu0 0.0
          %1015 = vmatpush2.msra.mxu0 0.0
          %1016 = vmatprep.subr.mxu0 0.0
          %1017 = vmatpush2.msra.mxu0 0.0
          %1018 = vmatprep.subr.mxu0 0.0
          %1019 = vmatpush2.msra.mxu0 0.0
          %1020 = vmatprep.subr.mxu0 0.0
          %1021 = vmatpush2.msra.mxu0 0.0
          %1022 = vmatprep.subr.mxu0 0.0
          %1023 = vmatpush2.msra.mxu0 0.0
          %1024 = vmatprep.subr.mxu0 0.0
          %1025 = vmatpush2.msra.mxu0 0.0
          %1026 = vmatprep.subr.mxu0 0.0
          %1027 = vmatpush2.msra.mxu0 0.0
          %1028 = vmatprep.mubr.f32.mxu0 0.0
          %1029 = vmatmul.mubr.f32.gmra.mxu0 %v771
          %v1030 = vpop.f32.mrf.mxu0
          %v1031 = vadd.f32 %v886, %v1030
          %v1032 = vpop.f32.mrf.mxu0
          %1033 = vmatprep.mubr.f32.mxu0 0.0
          %1034 = vmatmul.mubr.f32.gmra.mxu0 %v772
          %v1035 = vpop.f32.mrf.mxu0
          %v1036 = vadd.f32 %v891, %v1035
          %v1037 = vpop.f32.mrf.mxu0
          %1038 = vmatprep.mubr.f32.mxu0 0.0
          %1039 = vmatmul.mubr.f32.gmra.mxu0 %v773
          %v1040 = vpop.f32.mrf.mxu0
          %v1041 = vadd.f32 %v896, %v1040
          %v1042 = vpop.f32.mrf.mxu0
          %1043 = vmatprep.mubr.f32.mxu0 0.0
          %1044 = vmatmul.mubr.f32.gmra.mxu0 %v774
          %v1045 = vpop.f32.mrf.mxu0
          %v1046 = vadd.f32 %v901, %v1045
          %v1047 = vpop.f32.mrf.mxu0
          %1048 = vmatprep.mubr.f32.mxu0 0.0
          %1049 = vmatmul.mubr.f32.gmra.mxu0 %v775
          %v1050 = vpop.f32.mrf.mxu0
          %v1051 = vadd.f32 %v906, %v1050
          %v1052 = vpop.f32.mrf.mxu0
          %1053 = vmatprep.mubr.f32.mxu0 0.0
          %1054 = vmatmul.mubr.f32.gmra.mxu0 %v776
          %v1055 = vpop.f32.mrf.mxu0
          %v1056 = vadd.f32 %v911, %v1055
          %v1057 = vpop.f32.mrf.mxu0
          %1058 = vmatprep.mubr.f32.mxu0 0.0
          %1059 = vmatmul.mubr.f32.gmra.mxu0 %v777
          %v1060 = vpop.f32.mrf.mxu0
          %v1061 = vadd.f32 %v916, %v1060
          %v1062 = vpop.f32.mrf.mxu0
          %1063 = vmatprep.mubr.f32.mxu0 0.0
          %1064 = vmatmul.mubr.f32.gmra.mxu0 %v778
          %v1065 = vpop.f32.mrf.mxu0
          %v1066 = vadd.f32 %v921, %v1065
          %v1067 = vpop.f32.mrf.mxu0
          %1068 = vmatprep.mubr.f32.mxu0 0.0
          %1069 = vmatmul.mubr.f32.gmra.mxu0 %v779
          %v1070 = vpop.f32.mrf.mxu0
          %v1071 = vadd.f32 %v926, %v1070
          %v1072 = vpop.f32.mrf.mxu0
          %1073 = vmatprep.mubr.f32.mxu0 0.0
          %1074 = vmatmul.mubr.f32.gmra.mxu0 %v780
          %v1075 = vpop.f32.mrf.mxu0
          %v1076 = vadd.f32 %v931, %v1075
          %v1077 = vpop.f32.mrf.mxu0
          %1078 = vmatprep.mubr.f32.mxu0 0.0
          %1079 = vmatmul.mubr.f32.gmra.mxu0 %v781
          %v1080 = vpop.f32.mrf.mxu0
          %v1081 = vadd.f32 %v936, %v1080
          %v1082 = vpop.f32.mrf.mxu0
          %1083 = vmatprep.mubr.f32.mxu0 0.0
          %1084 = vmatmul.mubr.f32.gmra.mxu0 %v782
          %v1085 = vpop.f32.mrf.mxu0
          %v1086 = vadd.f32 %v941, %v1085
          %v1087 = vpop.f32.mrf.mxu0
          %1088 = vmatprep.mubr.f32.mxu0 0.0
          %1089 = vmatmul.mubr.f32.gmra.mxu0 %v783
          %v1090 = vpop.f32.mrf.mxu0
          %v1091 = vadd.f32 %v946, %v1090
          %v1092 = vpop.f32.mrf.mxu0
          %1093 = vmatprep.mubr.f32.mxu0 0.0
          %1094 = vmatmul.mubr.f32.gmra.mxu0 %v784
          %v1095 = vpop.f32.mrf.mxu0
          %v1096 = vadd.f32 %v951, %v1095
          %v1097 = vpop.f32.mrf.mxu0
          %1098 = vmatprep.mubr.f32.mxu0 0.0
          %1099 = vmatmul.mubr.f32.gmra.mxu0 %v785
          %v1100 = vpop.f32.mrf.mxu0
          %v1101 = vadd.f32 %v956, %v1100
          %v1102 = vpop.f32.mrf.mxu0
          %1103 = vmatprep.mubr.f32.mxu0 0.0
          %1104 = vmatmul.mubr.f32.gmra.mxu0 %v786
          %v1105 = vpop.f32.mrf.mxu0
          %v1106 = vadd.f32 %v961, %v1105
          %v1107 = vpop.f32.mrf.mxu0
          %1108 = vdwg.mxu0
          %v1109 = vld [vmem:[%s5] sm:$0x1]
          %v1111 = vlaneseq
          %v1112 = vshrl.u32 %v1111, 7
          %v1113 = vsub.s32 0, %v1112
          %v1114 = vrot.slane %v1109, %v1113
          %v1116 = vadd.f32 %v1031, %v1114
          %v1117 = vadd.f32 %v1036, %v1114
          %v1118 = vadd.f32 %v1041, %v1114
          %v1119 = vadd.f32 %v1046, %v1114
          %v1120 = vadd.f32 %v1051, %v1114
          %v1121 = vadd.f32 %v1056, %v1114
          %v1122 = vadd.f32 %v1061, %v1114
          %v1123 = vadd.f32 %v1066, %v1114
          %v1124 = vadd.f32 %v1071, %v1114
          %v1125 = vadd.f32 %v1076, %v1114
          %v1126 = vadd.f32 %v1081, %v1114
          %v1127 = vadd.f32 %v1086, %v1114
          %v1128 = vadd.f32 %v1091, %v1114
          %v1129 = vadd.f32 %v1096, %v1114
          %v1130 = vadd.f32 %v1101, %v1114
          %v1131 = vadd.f32 %v1106, %v1114
          %v1132 = vmax.f32 %v1116, 0.0
          %v1133 = vmax.f32 %v1117, 0.0
          %v1134 = vmax.f32 %v1118, 0.0
          %v1135 = vmax.f32 %v1119, 0.0
          %v1136 = vmax.f32 %v1120, 0.0
          %v1137 = vmax.f32 %v1121, 0.0
          %v1138 = vmax.f32 %v1122, 0.0
          %v1139 = vmax.f32 %v1123, 0.0
          %v1140 = vmax.f32 %v1124, 0.0
          %v1141 = vmax.f32 %v1125, 0.0
          %v1142 = vmax.f32 %v1126, 0.0
          %v1143 = vmax.f32 %v1127, 0.0
          %v1144 = vmax.f32 %v1128, 0.0
          %v1145 = vmax.f32 %v1129, 0.0
          %v1146 = vmax.f32 %v1130, 0.0
          %v1147 = vmax.f32 %v1131, 0.0
          %1148 = vst [vmem:[%s491] sm:$0xff] %v1132
          %1149 = vst [vmem:[%s491 + $0x8] sm:$0xff] %v1133
          %1150 = vst [vmem:[%s491 + $0x10] sm:$0xff] %v1134
          %1151 = vst [vmem:[%s491 + $0x18] sm:$0xff] %v1135
          %1152 = vst [vmem:[%s491 + $0x20] sm:$0xff] %v1136
          %1153 = vst [vmem:[%s491 + $0x28] sm:$0xff] %v1137
          %1154 = vst [vmem:[%s491 + $0x30] sm:$0xff] %v1138
          %1155 = vst [vmem:[%s491 + $0x38] sm:$0xff] %v1139
          %1156 = vst [vmem:[%s491 + $0x40] sm:$0xff] %v1140
          %1157 = vst [vmem:[%s491 + $0x48] sm:$0xff] %v1141
          %1158 = vst [vmem:[%s491 + $0x50] sm:$0xff] %v1142
          %1159 = vst [vmem:[%s491 + $0x58] sm:$0xff] %v1143
          %1160 = vst [vmem:[%s491 + $0x60] sm:$0xff] %v1144
          %1161 = vst [vmem:[%s491 + $0x68] sm:$0xff] %v1145
          %1162 = vst [vmem:[%s491 + $0x70] sm:$0xff] %v1146
          %1163 = vst [vmem:[%s491 + $0x78] sm:$0xff] %v1147
          %v1164 = vld [vmem:[%s6] sm:$0xff]
          %v1165 = vld [vmem:[%s6 + $0x8] sm:$0xff]
          %v1166 = vld [vmem:[%s6 + $0x10] sm:$0xff]
          %v1167 = vld [vmem:[%s6 + $0x18] sm:$0xff]
          %v1168 = vld [vmem:[%s6 + $0x20] sm:$0xff]
          %v1169 = vld [vmem:[%s6 + $0x28] sm:$0xff]
          %v1170 = vld [vmem:[%s6 + $0x30] sm:$0xff]
          %v1171 = vld [vmem:[%s6 + $0x38] sm:$0xff]
          %v1172 = vld [vmem:[%s6 + $0x40] sm:$0xff]
          %v1173 = vld [vmem:[%s6 + $0x48] sm:$0xff]
          %v1174 = vld [vmem:[%s6 + $0x50] sm:$0xff]
          %v1175 = vld [vmem:[%s6 + $0x58] sm:$0xff]
          %v1176 = vld [vmem:[%s6 + $0x60] sm:$0xff]
          %v1177 = vld [vmem:[%s6 + $0x68] sm:$0xff]
          %v1178 = vld [vmem:[%s6 + $0x70] sm:$0xff]
          %v1179 = vld [vmem:[%s6 + $0x78] sm:$0xff]
          %v1180 = vld [vmem:[%s7] sm:$0x1]
          %v1182 = vlaneseq
          %v1183 = vshrl.u32 %v1182, 7
          %v1184 = vsub.s32 0, %v1183
          %v1185 = vrot.slane %v1180, %v1184
          %1187 = vmatprep.subr.mxu0 0.0
          %1188 = vmatpush1.msra.mxu0 %v1179
          %1189 = vmatprep.subr.mxu0 0.0
          %1190 = vmatpush1.msra.mxu0 %v1178
          %1191 = vmatprep.subr.mxu0 0.0
          %1192 = vmatpush1.msra.mxu0 %v1177
          %1193 = vmatprep.subr.mxu0 0.0
          %1194 = vmatpush1.msra.mxu0 %v1176
          %1195 = vmatprep.subr.mxu0 0.0
          %1196 = vmatpush1.msra.mxu0 %v1175
          %1197 = vmatprep.subr.mxu0 0.0
          %1198 = vmatpush1.msra.mxu0 %v1174
          %1199 = vmatprep.subr.mxu0 0.0
          %1200 = vmatpush1.msra.mxu0 %v1173
          %1201 = vmatprep.subr.mxu0 0.0
          %1202 = vmatpush1.msra.mxu0 %v1172
          %1203 = vmatprep.subr.mxu0 0.0
          %1204 = vmatpush1.msra.mxu0 %v1171
          %1205 = vmatprep.subr.mxu0 0.0
          %1206 = vmatpush1.msra.mxu0 %v1170
          %1207 = vmatprep.subr.mxu0 0.0
          %1208 = vmatpush1.msra.mxu0 %v1169
          %1209 = vmatprep.subr.mxu0 0.0
          %1210 = vmatpush1.msra.mxu0 %v1168
          %1211 = vmatprep.subr.mxu0 0.0
          %1212 = vmatpush1.msra.mxu0 %v1167
          %1213 = vmatprep.subr.mxu0 0.0
          %1214 = vmatpush1.msra.mxu0 %v1166
          %1215 = vmatprep.subr.mxu0 0.0
          %1216 = vmatpush1.msra.mxu0 %v1165
          %1217 = vmatprep.subr.mxu0 0.0
          %1218 = vmatpush1.msra.mxu0 %v1164
          %1219 = vmatprep.subr.mxu0 0.0
          %1220 = vmatpush2.msra.mxu0 0.0
          %1221 = vmatprep.subr.mxu0 0.0
          %1222 = vmatpush2.msra.mxu0 0.0
          %1223 = vmatprep.subr.mxu0 0.0
          %1224 = vmatpush2.msra.mxu0 0.0
          %1225 = vmatprep.subr.mxu0 0.0
          %1226 = vmatpush2.msra.mxu0 0.0
          %1227 = vmatprep.subr.mxu0 0.0
          %1228 = vmatpush2.msra.mxu0 0.0
          %1229 = vmatprep.subr.mxu0 0.0
          %1230 = vmatpush2.msra.mxu0 0.0
          %1231 = vmatprep.subr.mxu0 0.0
          %1232 = vmatpush2.msra.mxu0 0.0
          %1233 = vmatprep.subr.mxu0 0.0
          %1234 = vmatpush2.msra.mxu0 0.0
          %1235 = vmatprep.subr.mxu0 0.0
          %1236 = vmatpush2.msra.mxu0 0.0
          %1237 = vmatprep.subr.mxu0 0.0
          %1238 = vmatpush2.msra.mxu0 0.0
          %1239 = vmatprep.subr.mxu0 0.0
          %1240 = vmatpush2.msra.mxu0 0.0
          %1241 = vmatprep.subr.mxu0 0.0
          %1242 = vmatpush2.msra.mxu0 0.0
          %1243 = vmatprep.subr.mxu0 0.0
          %1244 = vmatpush2.msra.mxu0 0.0
          %1245 = vmatprep.subr.mxu0 0.0
          %1246 = vmatpush2.msra.mxu0 0.0
          %1247 = vmatprep.subr.mxu0 0.0
          %1248 = vmatpush2.msra.mxu0 0.0
          %1249 = vmatprep.subr.mxu0 0.0
          %1250 = vmatpush2.msra.mxu0 0.0
          %1251 = vmatprep.mubr.f32.mxu0 0.0
          %1252 = vmatmul.mubr.f32.gmra.mxu0 %v1132
          %v1253 = vpop.f32.mrf.mxu0
          %v1254 = vadd.f32 %v1185, %v1253
          %v1255 = vpop.f32.mrf.mxu0
          %1256 = vmatprep.mubr.f32.mxu0 0.0
          %1257 = vmatmul.mubr.f32.gmra.mxu0 %v1133
          %v1258 = vpop.f32.mrf.mxu0
          %v1259 = vadd.f32 %v1185, %v1258
          %v1260 = vpop.f32.mrf.mxu0
          %1261 = vmatprep.mubr.f32.mxu0 0.0
          %1262 = vmatmul.mubr.f32.gmra.mxu0 %v1134
          %v1263 = vpop.f32.mrf.mxu0
          %v1264 = vadd.f32 %v1185, %v1263
          %v1265 = vpop.f32.mrf.mxu0
          %1266 = vmatprep.mubr.f32.mxu0 0.0
          %1267 = vmatmul.mubr.f32.gmra.mxu0 %v1135
          %v1268 = vpop.f32.mrf.mxu0
          %v1269 = vadd.f32 %v1185, %v1268
          %v1270 = vpop.f32.mrf.mxu0
          %1271 = vmatprep.mubr.f32.mxu0 0.0
          %1272 = vmatmul.mubr.f32.gmra.mxu0 %v1136
          %v1273 = vpop.f32.mrf.mxu0
          %v1274 = vadd.f32 %v1185, %v1273
          %v1275 = vpop.f32.mrf.mxu0
          %1276 = vmatprep.mubr.f32.mxu0 0.0
          %1277 = vmatmul.mubr.f32.gmra.mxu0 %v1137
          %v1278 = vpop.f32.mrf.mxu0
          %v1279 = vadd.f32 %v1185, %v1278
          %v1280 = vpop.f32.mrf.mxu0
          %1281 = vmatprep.mubr.f32.mxu0 0.0
          %1282 = vmatmul.mubr.f32.gmra.mxu0 %v1138
          %v1283 = vpop.f32.mrf.mxu0
          %v1284 = vadd.f32 %v1185, %v1283
          %v1285 = vpop.f32.mrf.mxu0
          %1286 = vmatprep.mubr.f32.mxu0 0.0
          %1287 = vmatmul.mubr.f32.gmra.mxu0 %v1139
          %v1288 = vpop.f32.mrf.mxu0
          %v1289 = vadd.f32 %v1185, %v1288
          %v1290 = vpop.f32.mrf.mxu0
          %1291 = vmatprep.mubr.f32.mxu0 0.0
          %1292 = vmatmul.mubr.f32.gmra.mxu0 %v1140
          %v1293 = vpop.f32.mrf.mxu0
          %v1294 = vadd.f32 %v1185, %v1293
          %v1295 = vpop.f32.mrf.mxu0
          %1296 = vmatprep.mubr.f32.mxu0 0.0
          %1297 = vmatmul.mubr.f32.gmra.mxu0 %v1141
          %v1298 = vpop.f32.mrf.mxu0
          %v1299 = vadd.f32 %v1185, %v1298
          %v1300 = vpop.f32.mrf.mxu0
          %1301 = vmatprep.mubr.f32.mxu0 0.0
          %1302 = vmatmul.mubr.f32.gmra.mxu0 %v1142
          %v1303 = vpop.f32.mrf.mxu0
          %v1304 = vadd.f32 %v1185, %v1303
          %v1305 = vpop.f32.mrf.mxu0
          %1306 = vmatprep.mubr.f32.mxu0 0.0
          %1307 = vmatmul.mubr.f32.gmra.mxu0 %v1143
          %v1308 = vpop.f32.mrf.mxu0
          %v1309 = vadd.f32 %v1185, %v1308
          %v1310 = vpop.f32.mrf.mxu0
          %1311 = vmatprep.mubr.f32.mxu0 0.0
          %1312 = vmatmul.mubr.f32.gmra.mxu0 %v1144
          %v1313 = vpop.f32.mrf.mxu0
          %v1314 = vadd.f32 %v1185, %v1313
          %v1315 = vpop.f32.mrf.mxu0
          %1316 = vmatprep.mubr.f32.mxu0 0.0
          %1317 = vmatmul.mubr.f32.gmra.mxu0 %v1145
          %v1318 = vpop.f32.mrf.mxu0
          %v1319 = vadd.f32 %v1185, %v1318
          %v1320 = vpop.f32.mrf.mxu0
          %1321 = vmatprep.mubr.f32.mxu0 0.0
          %1322 = vmatmul.mubr.f32.gmra.mxu0 %v1146
          %v1323 = vpop.f32.mrf.mxu0
          %v1324 = vadd.f32 %v1185, %v1323
          %v1325 = vpop.f32.mrf.mxu0
          %1326 = vmatprep.mubr.f32.mxu0 0.0
          %1327 = vmatmul.mubr.f32.gmra.mxu0 %v1147
          %v1328 = vpop.f32.mrf.mxu0
          %v1329 = vadd.f32 %v1185, %v1328
          %v1330 = vpop.f32.mrf.mxu0
          %1331 = vdwg.mxu0
          %vm1332 = vcmp.gt.f32.partialorder %v1254, 0.0
          %vm1333 = vcmp.gt.f32.partialorder %v1259, 0.0
          %vm1334 = vcmp.gt.f32.partialorder %v1264, 0.0
          %vm1335 = vcmp.gt.f32.partialorder %v1269, 0.0
          %vm1336 = vcmp.gt.f32.partialorder %v1274, 0.0
          %vm1337 = vcmp.gt.f32.partialorder %v1279, 0.0
          %vm1338 = vcmp.gt.f32.partialorder %v1284, 0.0
          %vm1339 = vcmp.gt.f32.partialorder %v1289, 0.0
          %vm1340 = vcmp.gt.f32.partialorder %v1294, 0.0
          %vm1341 = vcmp.gt.f32.partialorder %v1299, 0.0
          %vm1342 = vcmp.gt.f32.partialorder %v1304, 0.0
          %vm1343 = vcmp.gt.f32.partialorder %v1309, 0.0
          %vm1344 = vcmp.gt.f32.partialorder %v1314, 0.0
          %vm1345 = vcmp.gt.f32.partialorder %v1319, 0.0
          %vm1346 = vcmp.gt.f32.partialorder %v1324, 0.0
          %vm1347 = vcmp.gt.f32.partialorder %v1329, 0.0
          %v1348 = vld [vmem:[%s8] sm:$0x1]
          %v1350 = vlaneseq
          %v1351 = vshrl.u32 %v1350, 7
          %v1352 = vsub.s32 0, %v1351
          %v1353 = vrot.slane %v1348, %v1352
          %v1355 = vmul.f32 %v1353, %v1254
          %v1356 = vmul.f32 %v1353, %v1259
          %v1357 = vmul.f32 %v1353, %v1264
          %v1358 = vmul.f32 %v1353, %v1269
          %v1359 = vmul.f32 %v1353, %v1274
          %v1360 = vmul.f32 %v1353, %v1279
          %v1361 = vmul.f32 %v1353, %v1284
          %v1362 = vmul.f32 %v1353, %v1289
          %v1363 = vmul.f32 %v1353, %v1294
          %v1364 = vmul.f32 %v1353, %v1299
          %v1365 = vmul.f32 %v1353, %v1304
          %v1366 = vmul.f32 %v1353, %v1309
          %v1367 = vmul.f32 %v1353, %v1314
          %v1368 = vmul.f32 %v1353, %v1319
          %v1369 = vmul.f32 %v1353, %v1324
          %v1370 = vmul.f32 %v1353, %v1329
          %v1371 = vsel %vm1332, %v1254, %v1355
          %v1372 = vsel %vm1333, %v1259, %v1356
          %v1373 = vsel %vm1334, %v1264, %v1357
          %v1374 = vsel %vm1335, %v1269, %v1358
          %v1375 = vsel %vm1336, %v1274, %v1359
          %v1376 = vsel %vm1337, %v1279, %v1360
          %v1377 = vsel %vm1338, %v1284, %v1361
          %v1378 = vsel %vm1339, %v1289, %v1362
          %v1379 = vsel %vm1340, %v1294, %v1363
          %v1380 = vsel %vm1341, %v1299, %v1364
          %v1381 = vsel %vm1342, %v1304, %v1365
          %v1382 = vsel %vm1343, %v1309, %v1366
          %v1383 = vsel %vm1344, %v1314, %v1367
          %v1384 = vsel %vm1345, %v1319, %v1368
          %v1385 = vsel %vm1346, %v1324, %v1369
          %v1386 = vsel %vm1347, %v1329, %v1370
          %v1387 = vld [vmem:[%s9] sm:$0x1]
          %v1388 = vld [vmem:[#allocation3] sm:$0x1]
          %1390 = vset.pattern.permute.xlu0 0
          %1391 = vperm.xlu0 %1390, %v1388
          %v1392 = vpop.permute.xlu0 %1391
          %v1394 = vlaneseq
          %v1395 = vshrl.u32 %v1394, 7
          %v1396 = vsub.s32 0, %v1395
          %v1397 = vrot.slane %v1392, %v1396
          %1398 = vmatprep.subr.mxu0 0.0
          %1399 = vmatpush1.xpose.msra.mxu0 %v1386
          %1400 = vmatprep.subr.mxu0 0.0
          %1401 = vmatpush1.xpose.msra.mxu0 %v1385
          %1402 = vmatprep.subr.mxu0 0.0
          %1403 = vmatpush1.xpose.msra.mxu0 %v1384
          %1404 = vmatprep.subr.mxu0 0.0
          %1405 = vmatpush1.xpose.msra.mxu0 %v1383
          %1406 = vmatprep.subr.mxu0 0.0
          %1407 = vmatpush1.xpose.msra.mxu0 %v1382
          %1408 = vmatprep.subr.mxu0 0.0
          %1409 = vmatpush1.xpose.msra.mxu0 %v1381
          %1410 = vmatprep.subr.mxu0 0.0
          %1411 = vmatpush1.xpose.msra.mxu0 %v1380
          %1412 = vmatprep.subr.mxu0 0.0
          %1413 = vmatpush1.xpose.msra.mxu0 %v1379
          %1414 = vmatprep.subr.mxu0 0.0
          %1415 = vmatpush1.xpose.msra.mxu0 %v1378
          %1416 = vmatprep.subr.mxu0 0.0
          %1417 = vmatpush1.xpose.msra.mxu0 %v1377
          %1418 = vmatprep.subr.mxu0 0.0
          %1419 = vmatpush1.xpose.msra.mxu0 %v1376
          %1420 = vmatprep.subr.mxu0 0.0
          %1421 = vmatpush1.xpose.msra.mxu0 %v1375
          %1422 = vmatprep.subr.mxu0 0.0
          %1423 = vmatpush1.xpose.msra.mxu0 %v1374
          %1424 = vmatprep.subr.mxu0 0.0
          %1425 = vmatpush1.xpose.msra.mxu0 %v1373
          %1426 = vmatprep.subr.mxu0 0.0
          %1427 = vmatpush1.xpose.msra.mxu0 %v1372
          %1428 = vmatprep.subr.mxu0 0.0
          %1429 = vmatpush1.xpose.msra.mxu0 %v1371
          %1430 = vmatprep.subr.mxu0 0.0
          %1431 = vmatpush2.xpose.msra.mxu0 0.0
          %1432 = vmatprep.subr.mxu0 0.0
          %1433 = vmatpush2.xpose.msra.mxu0 0.0
          %1434 = vmatprep.subr.mxu0 0.0
          %1435 = vmatpush2.xpose.msra.mxu0 0.0
          %1436 = vmatprep.subr.mxu0 0.0
          %1437 = vmatpush2.xpose.msra.mxu0 0.0
          %1438 = vmatprep.subr.mxu0 0.0
          %1439 = vmatpush2.xpose.msra.mxu0 0.0
          %1440 = vmatprep.subr.mxu0 0.0
          %1441 = vmatpush2.xpose.msra.mxu0 0.0
          %1442 = vmatprep.subr.mxu0 0.0
          %1443 = vmatpush2.xpose.msra.mxu0 0.0
          %1444 = vmatprep.subr.mxu0 0.0
          %1445 = vmatpush2.xpose.msra.mxu0 0.0
          %1446 = vmatprep.subr.mxu0 0.0
          %1447 = vmatpush2.xpose.msra.mxu0 0.0
          %1448 = vmatprep.subr.mxu0 0.0
          %1449 = vmatpush2.xpose.msra.mxu0 0.0
          %1450 = vmatprep.subr.mxu0 0.0
          %1451 = vmatpush2.xpose.msra.mxu0 0.0
          %1452 = vmatprep.subr.mxu0 0.0
          %1453 = vmatpush2.xpose.msra.mxu0 0.0
          %1454 = vmatprep.subr.mxu0 0.0
          %1455 = vmatpush2.xpose.msra.mxu0 0.0
          %1456 = vmatprep.subr.mxu0 0.0
          %1457 = vmatpush2.xpose.msra.mxu0 0.0
          %1458 = vmatprep.subr.mxu0 0.0
          %1459 = vmatpush2.xpose.msra.mxu0 0.0
          %1460 = vmatprep.subr.mxu0 0.0
          %1461 = vmatpush2.xpose.msra.mxu0 0.0
          %1462 = vmatprep.mubr.f32.mxu0 0.0
          %1463 = vmatmul.mubr.f32.gmra.mxu0 %v1387
          %v1464 = vpop.f32.mrf.mxu0
          %v1465 = vadd.f32 %v1397, %v1464
          %v1466 = vpop.f32.mrf.mxu0
          %1467 = vdwg.mxu0
          %1468 = vst [vmem:[%s484] sm:$0x1] %v1465
        $region76: #{gcn_v_forward.1} parent=63 // pred_fallthru
          _
        %s1469 = sand.u32 %s303, 1
        %s1470 = scalar_lea.sflag [#allocation6], %s1469
        %s1471 = sand.u32 %s303, 1
        %s1472 = scalar_lea.vmem [#allocation7], %s1471
        %s1473 = sand.u32 %s329, 1
        %s1474 = scalar_lea.sflag [#allocation9], %s1473
        %s1475 = sand.u32 %s329, 1
        %s1476 = smul.addr %s1475, 128
        %s1477 = scalar_lea.vmem [#allocation8], %s1476
        // Predicated region
        $region77: #{gcn_v_forward.1} parent=63 // pred_check
          %p1478 = pneg %p313
        $region78: #{gcn_v_forward.1} parent=63 // pred_check_branch
          %1480 = sbr.rel (%p1478) target = $region80
        $region79: #{gcn_v_forward.1} parent=63 // pred_region
          %s1482 = ssub.s32 16, 16
          %1483 = vsyncadd %s1470, %s1482
          %s1484 = smul.addr %s39, 16
          %s1485 = scalar_lea.hbm %s11, %s1484
          %s1487 = sshll.u32 %s1472, 4
          %s1488 = int_to_ptr.vmem [resolvable:$true] %s1487
          %1490 = dma.vmem_to_hbm [thread:$0]  %s1488, 16, %s1485, %s1470
        $region80: #{gcn_v_forward.1} parent=63 // pred_fallthru
          _
        // Predicated region
        $region81: #{gcn_v_forward.1} parent=63 // pred_check
          %p1491 = pneg %p339
        $region82: #{gcn_v_forward.1} parent=63 // pred_check_branch
          %1493 = sbr.rel (%p1491) target = $region84
        $region83: #{gcn_v_forward.1} parent=63 // pred_region
          %s1494 = smul.u32 16, %s39
          %s1496 = ssub.s32 2048, 2048
          %1497 = vsyncadd %s1474, %s1496
          %s1498 = smul.addr %s1494, 128
          %s1499 = scalar_lea.hbm %s12, %s1498
          %s1500 = sshll.u32 %s1477, 4
          %s1501 = int_to_ptr.vmem [resolvable:$true] %s1500
          %1506 = dma.vmem_to_hbm [thread:$0]  %s1501, 2048, %s1499, %s1474, 128, 128, 8
        $region84: #{gcn_v_forward.1} parent=63 // pred_fallthru
          _
      $region64: #{gcn_v_forward.1} parent=5 // pred_fallthru
        _
      %p1507 = scmp.le.s32.totalorder 2, %s30
      // Predicated region
      $region85: #{gcn_v_forward.1} parent=5 // pred_check
        %p1508 = pneg %p1507
      $region86: #{gcn_v_forward.1} parent=5 // pred_check_branch
        %1510 = sbr.rel (%p1508) target = $region88
      $region87: #{gcn_v_forward.1} parent=5 // pred_region
        %s1511 = ssub.s32 %s30, 2
        // Predicated region
        $region89: #{gcn_v_forward.1} parent=87 // pred_check
          %p1512 = pneg %p319
        $region90: #{gcn_v_forward.1} parent=87 // pred_check_branch
          %1514 = sbr.rel (%p1512) target = $region92
        $region91: #{gcn_v_forward.1} parent=87 // pred_region
          %s1515 = sand.u32 %s304, 1
          %s1516 = scalar_lea.sflag [#allocation6], %s1515
          %s1517 = sand.u32 %s304, 1
          %s1518 = scalar_lea.vmem [#allocation7], %s1517
          %1519 = dma.done %s1516, 16
        $region92: #{gcn_v_forward.1} parent=87 // pred_fallthru
          _
        // Predicated region
        $region93: #{gcn_v_forward.1} parent=87 // pred_check
          %p1520 = pneg %p345
        $region94: #{gcn_v_forward.1} parent=87 // pred_check_branch
          %1522 = sbr.rel (%p1520) target = $region96
        $region95: #{gcn_v_forward.1} parent=87 // pred_region
          %s1523 = sand.u32 %s330, 1
          %s1524 = scalar_lea.sflag [#allocation9], %s1523
          %s1525 = sand.u32 %s330, 1
          %s1526 = smul.addr %s1525, 128
          %s1527 = scalar_lea.vmem [#allocation8], %s1526
          %1528 = dma.done %s1524, 2048
        $region96: #{gcn_v_forward.1} parent=87 // pred_fallthru
          _
      $region88: #{gcn_v_forward.1} parent=5 // pred_fallthru
        _
    $region6: #{gcn_v_forward.1} parent=1 // loop_footer
      %s34 = sadd.s32 1, %s30
    $region7: #{gcn_v_forward.1} parent=1 // loop_footer_branch
      %29 = sbr.rel target = $region3
    $region8: #{gcn_v_forward.1} parent=1 // loop_exit
      _
    %1529 = vsyncpa [#allocation5], 1
    %s1530 = scalar_lea.sflag [#allocation5], 1
    %1531 = vsyncpa %s1530, 1
    %1532 = vsyncpa [#allocation6], 1
    %s1533 = scalar_lea.sflag [#allocation6], 1
    %1534 = vsyncpa %s1533, 1
    %1535 = vsyncpa [#allocation9], 1
    %s1536 = scalar_lea.sflag [#allocation9], 1
    %1537 = vsyncpa %s1536, 1

</llo_original>
